<compile_context>
chip_gen: v6e
topology: v6e:2x2x1
jax: 0.10.0
libtpu: 0.0.40
codegen_flags: <defaults>
</compile_context>

<pallas_src>
import functools

import jax
import jax.numpy as jnp
from jax.experimental import pallas as pl
from jax.experimental.pallas import tpu as pltpu


def _encoder_lstm_kernel(n_layers, seq_len, b_pad,
                         gx0_hbm, wih_rest_ref, b_rest_ref, whh_ref,
                         h_out_ref, c_out_ref,
                         gx_sc, copy_sem, *maybe_y_sc):
    """Fused multi-layer LSTM recurrence (single grid step).

    gx0_hbm     : (S*Bp, 4H) f32 in HBM (memory_space=ANY); layer-0 gate
                  pre-activations (x @ W_ih + b), hoisted to one XLA matmul.
    wih_rest_ref: (max(L-1,1), H, 4H) bf16  input weights for layers >= 1
    b_rest_ref  : (max(L-1,1), 1, 4H) f32   combined biases for layers >= 1
    whh_ref     : (L, H, 4H) bf16           recurrent weights (gate order i,f,g,o)
    h_out_ref   : (L, Bp, H) f32            final hidden states
    c_out_ref   : (L, Bp, H) f32            final cell states
    gx_sc       : (S*Bp, 4H) f32 VMEM       current layer's gate pre-activations
    copy_sem    : DMA semaphore for the single gx0 HBM->VMEM copy
    maybe_y_sc  : (S*Bp, H) f32 VMEM        per-step h outputs (only when L > 1)
    """
    y_sc = maybe_y_sc[0] if maybe_y_sc else None
    H = h_out_ref.shape[-1]

    # Single HBM->VMEM DMA of the layer-0 pre-activations.  Replaces both the
    # double-buffered BlockSpec input AND the old gx_sc[...] = gx0_ref[...]
    # VMEM->VMEM copy: exactly one resident copy of the largest buffer.
    cp = pltpu.make_async_copy(gx0_hbm, gx_sc, copy_sem)
    cp.start()
    cp.wait()

    # Per-lane constants so the four gate nonlinearities fuse into ONE
    # full-width tanh per step (sigmoid(x)=0.5*tanh(0.5x)+0.5 on the i/f/o
    # lanes, plain tanh on the g lanes).  Hoisted out of all loops
    # (broadcasts are not CSE'd by JAX).
    lane = jax.lax.broadcasted_iota(jnp.int32, (1, 4 * H), 1)
    is_g = jnp.logical_and(lane >= 2 * H, lane < 3 * H)
    scale = jnp.where(is_g, 1.0, 0.5).astype(jnp.float32)   # pre- & post-scale
    shift = jnp.where(is_g, 0.0, 0.5).astype(jnp.float32)   # post-shift

    time_unroll = max(1, min(8, seq_len))   # bounded unroll, not full static

    for layer in range(n_layers):           # static unroll over layers (L small)
        if layer > 0:
            # Whole-sequence input projection for this layer: ONE tall bf16
            # matmul on the previous layer's outputs (resident in VMEM).
            # TODO(synk): chunk this projection over time (2-slot scratch) so
            # long sequences stay resident on v7x's 64 MiB VMEM.
            w_ih = wih_rest_ref[layer - 1]                    # (H, 4H) bf16
            bias = b_rest_ref[layer - 1]                      # (1, 4H) f32
            gx_sc[...] = (jnp.dot(y_sc[...].astype(jnp.bfloat16), w_ih,
                                  preferred_element_type=jnp.float32)
                          + bias)

        w_hh = whh_ref[layer]                                 # (H, 4H) bf16
        write_y = (layer + 1) < n_layers    # last layer's y is never read

        def step(t, carry, _w_hh=w_hh, _write_y=write_y):
            h_prev, c_prev = carry                            # f32 state
            row = pl.multiple_of(t * b_pad, b_pad)            # sublane-aligned
            # TODO(synk): hold W_hh in the MXU across the time loop with
            # pltpu.matmul_push_rhs / matmul_acc_lhs instead of re-feeding it.
            gates = (gx_sc[pl.ds(row, b_pad), :]
                     + jnp.dot(h_prev.astype(jnp.bfloat16), _w_hh,
                               preferred_element_type=jnp.float32))
            act = jnp.tanh(gates * scale) * scale + shift     # 1 EUP push/step
            i_g = act[:, 0 * H:1 * H]
            f_g = act[:, 1 * H:2 * H]
            g_g = act[:, 2 * H:3 * H]
            o_g = act[:, 3 * H:4 * H]
            c_new = f_g * c_prev + i_g * g_g                  # f32 cell state
            h_new = o_g * jnp.tanh(c_new)
            if _write_y:
                y_sc[pl.ds(row, b_pad), :] = h_new
            return (h_new, c_new)

        h0 = jnp.zeros((b_pad, H), jnp.float32)
        c0 = jnp.zeros((b_pad, H), jnp.float32)
        h_T, c_T = jax.lax.fori_loop(0, seq_len, step, (h0, c0),
                                     unroll=time_unroll)

        # Final states written exactly once per layer (no per-step stores).
        # TODO(synk): pack h/c into one lane-dense (L, Bp*H) slab when H < 128.
        h_out_ref[layer] = h_T
        c_out_ref[layer] = c_T
    # TODO(synk): wavefront the layer x time loops (layer l at wave t-l) and
    # shard the batch across v7x's two TensorCores when b_pad >= 16.


def encoder_lstm_pallas(gx0, wih_rest, b_rest, whh_all, *,
                        n_layers, seq_len, b_pad):
    SB, G4 = gx0.shape
    H = G4 // 4
    kernel = functools.partial(_encoder_lstm_kernel, n_layers, seq_len, b_pad)

    scratch = [pltpu.VMEM((SB, G4), jnp.float32),    # gx_sc (single copy)
               pltpu.SemaphoreType.DMA(())]          # gx0 HBM->VMEM DMA sem
    if n_layers > 1:
        scratch.append(pltpu.VMEM((SB, H), jnp.float32))   # y_sc

    # VMEM budget from the actual shapes: weights/outputs are pipeline
    # double-buffered; gx0 stays in HBM and lands once in gx_sc.
    weight_bytes = 2 * (whh_all.size * whh_all.dtype.itemsize
                        + wih_rest.size * wih_rest.dtype.itemsize
                        + b_rest.size * b_rest.dtype.itemsize)
    out_bytes = 2 * 2 * n_layers * b_pad * H * 4
    scratch_bytes = SB * G4 * 4 + (SB * H * 4 if n_layers > 1 else 0)
    try:
        phys_vmem = pltpu.get_tpu_info().vmem_capacity_bytes
    except Exception:
        phys_vmem = 64 * 1024 * 1024    # conservative (v7x) fallback
    vmem_limit = int(min(int(0.75 * phys_vmem),
                         max(16 * 1024 * 1024,
                             2 * (weight_bytes + out_bytes + scratch_bytes))))

    return pl.pallas_call(
        kernel,
        out_shape=(jax.ShapeDtypeStruct((n_layers, b_pad, H), jnp.float32),
                   jax.ShapeDtypeStruct((n_layers, b_pad, H), jnp.float32)),
        grid_spec=pltpu.PrefetchScalarGridSpec(
            num_scalar_prefetch=0,
            grid=(1,),
            in_specs=[
                pl.BlockSpec(memory_space=pl.ANY),           # gx0 stays in HBM
                pl.BlockSpec(wih_rest.shape, lambda i: (0, 0, 0)),
                pl.BlockSpec(b_rest.shape, lambda i: (0, 0, 0)),
                pl.BlockSpec(whh_all.shape, lambda i: (0, 0, 0)),
            ],
            out_specs=[
                pl.BlockSpec((n_layers, b_pad, H), lambda i: (0, 0, 0)),
                pl.BlockSpec((n_layers, b_pad, H), lambda i: (0, 0, 0)),
            ],
            scratch_shapes=scratch,
        ),
        compiler_params=pltpu.CompilerParams(
            dimension_semantics=("arbitrary",),
            vmem_limit_bytes=vmem_limit),
    )(gx0, wih_rest, b_rest, whh_all)


def encoder_forward(src, params):
    """Pallas implementation of Encoder.forward.

    src: (S, B) int32 token ids.
    Returns (hidden, cell), each (n_layers, B, H) float32.
    """
    S, B = src.shape
    lstm = params["lstm"]
    n_layers = len(lstm)
    H = lstm[0]["w_hh_t"].shape[0]

    # Embedding lookup: plain-JAX glue (gather), like nn.Embedding.
    x = jnp.take(params["embed"], src, axis=0)               # (S, B, E)
    # Dropout: identity in eval mode.
    # TODO(synk): training-mode dropout mask (pltpu.prng_random_bits).

    # Pad batch to a multiple of 8 so all in-kernel slices are sublane-aligned.
    b_pad = ((B + 7) // 8) * 8
    if b_pad != B:
        x = jnp.pad(x, ((0, 0), (0, b_pad - B), (0, 0)))
    E = x.shape[-1]

    # Hoisted layer-0 input projection: one big bf16 MXU matmul, f32 accumulate.
    gx0 = (jnp.dot(x.reshape(S * b_pad, E).astype(jnp.bfloat16),
                   lstm[0]["w_ih_t"].astype(jnp.bfloat16),
                   preferred_element_type=jnp.float32)
           + lstm[0]["b"])

    whh_all = jnp.stack([l["w_hh_t"] for l in lstm], axis=0).astype(jnp.bfloat16)
    if n_layers > 1:
        wih_rest = jnp.stack([lstm[l]["w_ih_t"] for l in range(1, n_layers)],
                             axis=0).astype(jnp.bfloat16)
        b_rest = jnp.stack([lstm[l]["b"] for l in range(1, n_layers)], axis=0)
    else:  # dummies (never read by the kernel)
        wih_rest = jnp.zeros((1, H, 4 * H), jnp.bfloat16)
        b_rest = jnp.zeros((1, 1, 4 * H), jnp.float32)

    h_pad, c_pad = encoder_lstm_pallas(gx0, wih_rest, b_rest, whh_all,
                                       n_layers=n_layers, seq_len=S,
                                       b_pad=b_pad)
    return h_pad[:, :B], c_pad[:, :B]


def _reference_forward(src, params, matmul_dtype=jnp.float32):
    """Pure-JAX reference (lax.scan LSTM).

    matmul_dtype controls the precision of the matmul *operands* only
    (accumulation and state stay f32), so the kernel's bf16-operand path can
    be checked tightly while full-f32 gives the PyTorch-semantics baseline.
    """
    x = jnp.take(params["embed"], src, axis=0)
    h_list, c_list = [], []
    for layer in params["lstm"]:
        w_ih_t = layer["w_ih_t"].astype(matmul_dtype)
        w_hh_t = layer["w_hh_t"].astype(matmul_dtype)
        b = layer["b"]
        H = w_hh_t.shape[0]
        B = x.shape[1]

        def step(carry, x_t):
            h, c = carry
            gates = (jnp.dot(x_t.astype(matmul_dtype), w_ih_t,
                             preferred_element_type=jnp.float32)
                     + jnp.dot(h.astype(matmul_dtype), w_hh_t,
                               preferred_element_type=jnp.float32)
                     + b)
            i_g = jax.nn.sigmoid(gates[:, 0 * H:1 * H])
            f_g = jax.nn.sigmoid(gates[:, 1 * H:2 * H])
            g_g = jnp.tanh(gates[:, 2 * H:3 * H])
            o_g = jax.nn.sigmoid(gates[:, 3 * H:4 * H])
            c_new = f_g * c + i_g * g_g
            h_new = o_g * jnp.tanh(c_new)
            return (h_new, c_new), h_new

        init = (jnp.zeros((B, H), jnp.float32), jnp.zeros((B, H), jnp.float32))
        (h_T, c_T), y = jax.lax.scan(step, init, x)
        h_list.append(h_T)
        c_list.append(c_T)
        x = y
    return jnp.stack(h_list, axis=0), jnp.stack(c_list, axis=0)


def make_params(key, input_size, embed_size, hidden_size, n_layers):
    """Deterministic parameter init (shapes match nn.Embedding / nn.LSTM)."""
    keys = jax.random.split(key, 1 + 4 * n_layers)
    embed = jax.random.normal(keys[0], (input_size, embed_size),
                              dtype=jnp.float32)
    lstm = []
    bound = 1.0 / jnp.sqrt(jnp.float32(hidden_size))
    for layer in range(n_layers):
        d_in = embed_size if layer == 0 else hidden_size
        k0, k1, k2, k3 = keys[1 + 4 * layer: 1 + 4 * (layer + 1)]
        # PyTorch stores weight_ih as (4H, D); we keep the transposed (D, 4H)
        # layout so the kernel does x @ W directly.  Gate order i,f,g,o.
        w_ih_t = jax.random.uniform(k0, (d_in, 4 * hidden_size),
                                    minval=-bound, maxval=bound,
                                    dtype=jnp.float32)
        w_hh_t = jax.random.uniform(k1, (hidden_size, 4 * hidden_size),
                                    minval=-bound, maxval=bound,
                                    dtype=jnp.float32)
        b_ih = jax.random.uniform(k2, (4 * hidden_size,), minval=-bound,
                                  maxval=bound, dtype=jnp.float32)
        b_hh = jax.random.uniform(k3, (4 * hidden_size,), minval=-bound,
                                  maxval=bound, dtype=jnp.float32)
        lstm.append({"w_ih_t": w_ih_t, "w_hh_t": w_hh_t,
                     "b": (b_ih + b_hh)[None, :]})
    return {"embed": embed, "lstm": lstm}


if __name__ == "__main__":
    # Small, deterministic configuration.
    input_size = 50     # vocab
    embed_size = 16
    hidden_size = 32
    n_layers = 2
    seq_len = 8
    batch = 2

    key = jax.random.PRNGKey(0)
    pkey, skey = jax.random.split(key)
    params = make_params(pkey, input_size, embed_size, hidden_size, n_layers)
    src = jax.random.randint(skey, (seq_len, batch), 0, input_size,
                             dtype=jnp.int32)

    hidden, cell = encoder_forward(src, params)
    hidden, cell = jax.block_until_ready((hidden, cell))

    assert hidden.shape == (n_layers, batch, hidden_size)
    assert cell.shape == (n_layers, batch, hidden_size)

    # Tight check against a reference using the same bf16 matmul operands.
    h_bf, c_bf = _reference_forward(src, params, matmul_dtype=jnp.bfloat16)
    assert jnp.allclose(hidden, h_bf, atol=1e-4, rtol=1e-4)
    assert jnp.allclose(cell, c_bf, atol=1e-4, rtol=1e-4)

    # Loose sanity check against the full-f32 (PyTorch-semantics) reference:
    # only bf16 matmul-operand rounding separates the two.
    h32, c32 = _reference_forward(src, params, matmul_dtype=jnp.float32)
    assert jnp.allclose(hidden, h32, atol=5e-2, rtol=5e-2)
    assert jnp.allclose(cell, c32, atol=5e-2, rtol=5e-2)

    print("KERNEL_OK")
</pallas_src>

<mosaic_0001>
module attributes {stable_mosaic.version = 11 : i64} {
  func.func @_encoder_lstm_kernel(%arg0: i32, %arg1: memref<64x128xf32, #tpu.memory_space<any>>, %arg2: memref<1x32x128xbf16, #tpu.memory_space<vmem>>, %arg3: memref<1x1x128xf32, #tpu.memory_space<vmem>>, %arg4: memref<2x32x128xbf16, #tpu.memory_space<vmem>>, %arg5: memref<2x8x32xf32, #tpu.memory_space<vmem>>, %arg6: memref<2x8x32xf32, #tpu.memory_space<vmem>>, %arg7: memref<64x128xf32, #tpu.memory_space<vmem>>, %arg8: memref<!tpu.dma_semaphore, #tpu.memory_space<semaphore_mem>>, %arg9: memref<64x32xf32, #tpu.memory_space<vmem>>) attributes {dimension_semantics = [#tpu.dimension_semantics<arbitrary>], iteration_bounds = array<i64: 1>, scalar_prefetch = 0 : i64, scratch_operands = 3 : i64, tpu.core_type = #tpu.core_type<tc>, window_params = [{}, {pipeline_mode = #tpu.pipeline_mode<synchronous>, transform_indices = @transform_1, window_bounds = array<i64: 1, 32, 128>}, {pipeline_mode = #tpu.pipeline_mode<synchronous>, transform_indices = @transform_2, window_bounds = array<i64: 1, 1, 128>}, {pipeline_mode = #tpu.pipeline_mode<synchronous>, transform_indices = @transform_3, window_bounds = array<i64: 2, 32, 128>}, {pipeline_mode = #tpu.pipeline_mode<synchronous>, transform_indices = @transform_4, window_bounds = array<i64: 2, 8, 32>}, {pipeline_mode = #tpu.pipeline_mode<synchronous>, transform_indices = @transform_5, window_bounds = array<i64: 2, 8, 32>}]} {
    tpu.enqueue_dma source(%arg1 : memref<64x128xf32, #tpu.memory_space<any>>) target(%arg7 : memref<64x128xf32, #tpu.memory_space<vmem>>) target_semaphore(%arg8 : memref<!tpu.dma_semaphore, #tpu.memory_space<semaphore_mem>>)
    tpu.wait_dma2 semaphore(%arg8 : memref<!tpu.dma_semaphore, #tpu.memory_space<semaphore_mem>>) src(%arg1 : memref<64x128xf32, #tpu.memory_space<any>>) dst(%arg7 : memref<64x128xf32, #tpu.memory_space<vmem>>)
    %0 = tpu.iota {dimensions = array<i32: 1>} : vector<1x128xi32>
    %c64_i32 = arith.constant 64 : i32
    %1 = vector.broadcast %c64_i32 : i32 to vector<1x128xi32>
    %2 = arith.cmpi sge, %0, %1 : vector<1x128xi32>
    %c96_i32 = arith.constant 96 : i32
    %3 = vector.broadcast %c96_i32 : i32 to vector<1x128xi32>
    %4 = arith.cmpi slt, %0, %3 : vector<1x128xi32>
    %5 = arith.andi %2, %4 : vector<1x128xi1>
    %cst = arith.constant 1.000000e+00 : f32
    %cst_0 = arith.constant 5.000000e-01 : f32
    %6 = vector.broadcast %cst : f32 to vector<1x128xf32>
    %7 = vector.broadcast %cst_0 : f32 to vector<1x128xf32>
    %8 = arith.select %5, %6, %7 : vector<1x128xi1>, vector<1x128xf32>
    %cst_1 = arith.constant 0.000000e+00 : f32
    %cst_2 = arith.constant 5.000000e-01 : f32
    %9 = vector.broadcast %cst_1 : f32 to vector<1x128xf32>
    %10 = vector.broadcast %cst_2 : f32 to vector<1x128xf32>
    %11 = arith.select %5, %9, %10 : vector<1x128xi1>, vector<1x128xf32>
    %c0 = arith.constant 0 : index
    %c0_3 = arith.constant 0 : index
    %c0_4 = arith.constant 0 : index
    %12 = vector.load %arg4[%c0, %c0_3, %c0_4] : memref<2x32x128xbf16, #tpu.memory_space<vmem>>, vector<1x32x128xbf16>
    %13 = vector.shape_cast %12 : vector<1x32x128xbf16> to vector<32x128xbf16>
    %cst_5 = arith.constant 0.000000e+00 : f32
    %14 = vector.broadcast %cst_5 : f32 to vector<8x32xf32>
    %cst_6 = arith.constant 0.000000e+00 : f32
    %15 = vector.broadcast %cst_6 : f32 to vector<8x32xf32>
    %c0_i32 = arith.constant 0 : i32
    %c8_i32 = arith.constant 8 : i32
    %16 = arith.muli %c0_i32, %c8_i32 : i32
    %17 = tpu.assume_multiple %16, 8 : i32
    %18 = arith.index_cast %17 : i32 to index
    %c0_7 = arith.constant 0 : index
    %19 = vector.load %arg7[%18, %c0_7] : memref<64x128xf32, #tpu.memory_space<vmem>>, vector<8x128xf32>
    %20 = arith.truncf %14 : vector<8x32xf32> to vector<8x32xbf16>
    %cst_8 = arith.constant dense<0.000000e+00> : vector<8x128xf32>
    %21 = tpu.matmul %20, %13, %cst_8 {dimension_numbers = #tpu.dot_dimension_numbers<[1], [0], [0], [1], [0, 0, 1, 1], [], []>} : vector<8x32xbf16>, vector<32x128xbf16>, vector<8x128xf32> -> vector<8x128xf32>
    %22 = arith.addf %19, %21 : vector<8x128xf32>
    %23 = vector.broadcast %8 : vector<1x128xf32> to vector<8x128xf32>
    %24 = arith.mulf %22, %23 : vector<8x128xf32>
    %25 = math.tanh %24 : vector<8x128xf32>
    %26 = vector.broadcast %8 : vector<1x128xf32> to vector<8x128xf32>
    %27 = arith.mulf %25, %26 : vector<8x128xf32>
    %28 = vector.broadcast %11 : vector<1x128xf32> to vector<8x128xf32>
    %29 = arith.addf %27, %28 : vector<8x128xf32>
    %30 = vector.extract_strided_slice %29 {offsets = [0, 0], sizes = [8, 32], strides = [1, 1]} : vector<8x128xf32> to vector<8x32xf32>
    %31 = vector.extract_strided_slice %29 {offsets = [0, 32], sizes = [8, 32], strides = [1, 1]} : vector<8x128xf32> to vector<8x32xf32>
    %32 = vector.extract_strided_slice %29 {offsets = [0, 64], sizes = [8, 32], strides = [1, 1]} : vector<8x128xf32> to vector<8x32xf32>
    %33 = vector.extract_strided_slice %29 {offsets = [0, 96], sizes = [8, 32], strides = [1, 1]} : vector<8x128xf32> to vector<8x32xf32>
    %34 = arith.mulf %31, %15 : vector<8x32xf32>
    %35 = arith.mulf %30, %32 : vector<8x32xf32>
    %36 = arith.addf %34, %35 : vector<8x32xf32>
    %37 = math.tanh %36 : vector<8x32xf32>
    %38 = arith.mulf %33, %37 : vector<8x32xf32>
    %39 = arith.index_cast %17 : i32 to index
    %c0_9 = arith.constant 0 : index
    %40 = vector.load %arg9[%39, %c0_9] : memref<64x32xf32, #tpu.memory_space<vmem>>, vector<8x32xf32>
    tpu.vector_store %arg9[%39, %c0_9], %38 {strides = array<i32>} : memref<64x32xf32, #tpu.memory_space<vmem>>, vector<8x32xf32>,
    %c1_i32 = arith.constant 1 : i32
    %c8_i32_10 = arith.constant 8 : i32
    %41 = arith.muli %c1_i32, %c8_i32_10 : i32
    %42 = tpu.assume_multiple %41, 8 : i32
    %43 = arith.index_cast %42 : i32 to index
    %c0_11 = arith.constant 0 : index
    %44 = vector.load %arg7[%43, %c0_11] : memref<64x128xf32, #tpu.memory_space<vmem>>, vector<8x128xf32>
    %45 = arith.truncf %38 : vector<8x32xf32> to vector<8x32xbf16>
    %cst_12 = arith.constant dense<0.000000e+00> : vector<8x128xf32>
    %46 = tpu.matmul %45, %13, %cst_12 {dimension_numbers = #tpu.dot_dimension_numbers<[1], [0], [0], [1], [0, 0, 1, 1], [], []>} : vector<8x32xbf16>, vector<32x128xbf16>, vector<8x128xf32> -> vector<8x128xf32>
    %47 = arith.addf %44, %46 : vector<8x128xf32>
    %48 = vector.broadcast %8 : vector<1x128xf32> to vector<8x128xf32>
    %49 = arith.mulf %47, %48 : vector<8x128xf32>
    %50 = math.tanh %49 : vector<8x128xf32>
    %51 = vector.broadcast %8 : vector<1x128xf32> to vector<8x128xf32>
    %52 = arith.mulf %50, %51 : vector<8x128xf32>
    %53 = vector.broadcast %11 : vector<1x128xf32> to vector<8x128xf32>
    %54 = arith.addf %52, %53 : vector<8x128xf32>
    %55 = vector.extract_strided_slice %54 {offsets = [0, 0], sizes = [8, 32], strides = [1, 1]} : vector<8x128xf32> to vector<8x32xf32>
    %56 = vector.extract_strided_slice %54 {offsets = [0, 32], sizes = [8, 32], strides = [1, 1]} : vector<8x128xf32> to vector<8x32xf32>
    %57 = vector.extract_strided_slice %54 {offsets = [0, 64], sizes = [8, 32], strides = [1, 1]} : vector<8x128xf32> to vector<8x32xf32>
    %58 = vector.extract_strided_slice %54 {offsets = [0, 96], sizes = [8, 32], strides = [1, 1]} : vector<8x128xf32> to vector<8x32xf32>
    %59 = arith.mulf %56, %36 : vector<8x32xf32>
    %60 = arith.mulf %55, %57 : vector<8x32xf32>
    %61 = arith.addf %59, %60 : vector<8x32xf32>
    %62 = math.tanh %61 : vector<8x32xf32>
    %63 = arith.mulf %58, %62 : vector<8x32xf32>
    %64 = arith.index_cast %42 : i32 to index
    %c0_13 = arith.constant 0 : index
    %65 = vector.load %arg9[%64, %c0_13] : memref<64x32xf32, #tpu.memory_space<vmem>>, vector<8x32xf32>
    tpu.vector_store %arg9[%64, %c0_13], %63 {strides = array<i32>} : memref<64x32xf32, #tpu.memory_space<vmem>>, vector<8x32xf32>,
    %c2_i32 = arith.constant 2 : i32
    %c8_i32_14 = arith.constant 8 : i32
    %66 = arith.muli %c2_i32, %c8_i32_14 : i32
    %67 = tpu.assume_multiple %66, 8 : i32
    %68 = arith.index_cast %67 : i32 to index
    %c0_15 = arith.constant 0 : index
    %69 = vector.load %arg7[%68, %c0_15] : memref<64x128xf32, #tpu.memory_space<vmem>>, vector<8x128xf32>
    %70 = arith.truncf %63 : vector<8x32xf32> to vector<8x32xbf16>
    %cst_16 = arith.constant dense<0.000000e+00> : vector<8x128xf32>
    %71 = tpu.matmul %70, %13, %cst_16 {dimension_numbers = #tpu.dot_dimension_numbers<[1], [0], [0], [1], [0, 0, 1, 1], [], []>} : vector<8x32xbf16>, vector<32x128xbf16>, vector<8x128xf32> -> vector<8x128xf32>
    %72 = arith.addf %69, %71 : vector<8x128xf32>
    %73 = vector.broadcast %8 : vector<1x128xf32> to vector<8x128xf32>
    %74 = arith.mulf %72, %73 : vector<8x128xf32>
    %75 = math.tanh %74 : vector<8x128xf32>
    %76 = vector.broadcast %8 : vector<1x128xf32> to vector<8x128xf32>
    %77 = arith.mulf %75, %76 : vector<8x128xf32>
    %78 = vector.broadcast %11 : vector<1x128xf32> to vector<8x128xf32>
    %79 = arith.addf %77, %78 : vector<8x128xf32>
    %80 = vector.extract_strided_slice %79 {offsets = [0, 0], sizes = [8, 32], strides = [1, 1]} : vector<8x128xf32> to vector<8x32xf32>
    %81 = vector.extract_strided_slice %79 {offsets = [0, 32], sizes = [8, 32], strides = [1, 1]} : vector<8x128xf32> to vector<8x32xf32>
    %82 = vector.extract_strided_slice %79 {offsets = [0, 64], sizes = [8, 32], strides = [1, 1]} : vector<8x128xf32> to vector<8x32xf32>
    %83 = vector.extract_strided_slice %79 {offsets = [0, 96], sizes = [8, 32], strides = [1, 1]} : vector<8x128xf32> to vector<8x32xf32>
    %84 = arith.mulf %81, %61 : vector<8x32xf32>
    %85 = arith.mulf %80, %82 : vector<8x32xf32>
    %86 = arith.addf %84, %85 : vector<8x32xf32>
    %87 = math.tanh %86 : vector<8x32xf32>
    %88 = arith.mulf %83, %87 : vector<8x32xf32>
    %89 = arith.index_cast %67 : i32 to index
    %c0_17 = arith.constant 0 : index
    %90 = vector.load %arg9[%89, %c0_17] : memref<64x32xf32, #tpu.memory_space<vmem>>, vector<8x32xf32>
    tpu.vector_store %arg9[%89, %c0_17], %88 {strides = array<i32>} : memref<64x32xf32, #tpu.memory_space<vmem>>, vector<8x32xf32>,
    %c3_i32 = arith.constant 3 : i32
    %c8_i32_18 = arith.constant 8 : i32
    %91 = arith.muli %c3_i32, %c8_i32_18 : i32
    %92 = tpu.assume_multiple %91, 8 : i32
    %93 = arith.index_cast %92 : i32 to index
    %c0_19 = arith.constant 0 : index
    %94 = vector.load %arg7[%93, %c0_19] : memref<64x128xf32, #tpu.memory_space<vmem>>, vector<8x128xf32>
    %95 = arith.truncf %88 : vector<8x32xf32> to vector<8x32xbf16>
    %cst_20 = arith.constant dense<0.000000e+00> : vector<8x128xf32>
    %96 = tpu.matmul %95, %13, %cst_20 {dimension_numbers = #tpu.dot_dimension_numbers<[1], [0], [0], [1], [0, 0, 1, 1], [], []>} : vector<8x32xbf16>, vector<32x128xbf16>, vector<8x128xf32> -> vector<8x128xf32>
    %97 = arith.addf %94, %96 : vector<8x128xf32>
    %98 = vector.broadcast %8 : vector<1x128xf32> to vector<8x128xf32>
    %99 = arith.mulf %97, %98 : vector<8x128xf32>
    %100 = math.tanh %99 : vector<8x128xf32>
    %101 = vector.broadcast %8 : vector<1x128xf32> to vector<8x128xf32>
    %102 = arith.mulf %100, %101 : vector<8x128xf32>
    %103 = vector.broadcast %11 : vector<1x128xf32> to vector<8x128xf32>
    %104 = arith.addf %102, %103 : vector<8x128xf32>
    %105 = vector.extract_strided_slice %104 {offsets = [0, 0], sizes = [8, 32], strides = [1, 1]} : vector<8x128xf32> to vector<8x32xf32>
    %106 = vector.extract_strided_slice %104 {offsets = [0, 32], sizes = [8, 32], strides = [1, 1]} : vector<8x128xf32> to vector<8x32xf32>
    %107 = vector.extract_strided_slice %104 {offsets = [0, 64], sizes = [8, 32], strides = [1, 1]} : vector<8x128xf32> to vector<8x32xf32>
    %108 = vector.extract_strided_slice %104 {offsets = [0, 96], sizes = [8, 32], strides = [1, 1]} : vector<8x128xf32> to vector<8x32xf32>
    %109 = arith.mulf %106, %86 : vector<8x32xf32>
    %110 = arith.mulf %105, %107 : vector<8x32xf32>
    %111 = arith.addf %109, %110 : vector<8x32xf32>
    %112 = math.tanh %111 : vector<8x32xf32>
    %113 = arith.mulf %108, %112 : vector<8x32xf32>
    %114 = arith.index_cast %92 : i32 to index
    %c0_21 = arith.constant 0 : index
    %115 = vector.load %arg9[%114, %c0_21] : memref<64x32xf32, #tpu.memory_space<vmem>>, vector<8x32xf32>
    tpu.vector_store %arg9[%114, %c0_21], %113 {strides = array<i32>} : memref<64x32xf32, #tpu.memory_space<vmem>>, vector<8x32xf32>,
    %c4_i32 = arith.constant 4 : i32
    %c8_i32_22 = arith.constant 8 : i32
    %116 = arith.muli %c4_i32, %c8_i32_22 : i32
    %117 = tpu.assume_multiple %116, 8 : i32
    %118 = arith.index_cast %117 : i32 to index
    %c0_23 = arith.constant 0 : index
    %119 = vector.load %arg7[%118, %c0_23] : memref<64x128xf32, #tpu.memory_space<vmem>>, vector<8x128xf32>
    %120 = arith.truncf %113 : vector<8x32xf32> to vector<8x32xbf16>
    %cst_24 = arith.constant dense<0.000000e+00> : vector<8x128xf32>
    %121 = tpu.matmul %120, %13, %cst_24 {dimension_numbers = #tpu.dot_dimension_numbers<[1], [0], [0], [1], [0, 0, 1, 1], [], []>} : vector<8x32xbf16>, vector<32x128xbf16>, vector<8x128xf32> -> vector<8x128xf32>
    %122 = arith.addf %119, %121 : vector<8x128xf32>
    %123 = vector.broadcast %8 : vector<1x128xf32> to vector<8x128xf32>
    %124 = arith.mulf %122, %123 : vector<8x128xf32>
    %125 = math.tanh %124 : vector<8x128xf32>
    %126 = vector.broadcast %8 : vector<1x128xf32> to vector<8x128xf32>
    %127 = arith.mulf %125, %126 : vector<8x128xf32>
    %128 = vector.broadcast %11 : vector<1x128xf32> to vector<8x128xf32>
    %129 = arith.addf %127, %128 : vector<8x128xf32>
    %130 = vector.extract_strided_slice %129 {offsets = [0, 0], sizes = [8, 32], strides = [1, 1]} : vector<8x128xf32> to vector<8x32xf32>
    %131 = vector.extract_strided_slice %129 {offsets = [0, 32], sizes = [8, 32], strides = [1, 1]} : vector<8x128xf32> to vector<8x32xf32>
    %132 = vector.extract_strided_slice %129 {offsets = [0, 64], sizes = [8, 32], strides = [1, 1]} : vector<8x128xf32> to vector<8x32xf32>
    %133 = vector.extract_strided_slice %129 {offsets = [0, 96], sizes = [8, 32], strides = [1, 1]} : vector<8x128xf32> to vector<8x32xf32>
    %134 = arith.mulf %131, %111 : vector<8x32xf32>
    %135 = arith.mulf %130, %132 : vector<8x32xf32>
    %136 = arith.addf %134, %135 : vector<8x32xf32>
    %137 = math.tanh %136 : vector<8x32xf32>
    %138 = arith.mulf %133, %137 : vector<8x32xf32>
    %139 = arith.index_cast %117 : i32 to index
    %c0_25 = arith.constant 0 : index
    %140 = vector.load %arg9[%139, %c0_25] : memref<64x32xf32, #tpu.memory_space<vmem>>, vector<8x32xf32>
    tpu.vector_store %arg9[%139, %c0_25], %138 {strides = array<i32>} : memref<64x32xf32, #tpu.memory_space<vmem>>, vector<8x32xf32>,
    %c5_i32 = arith.constant 5 : i32
    %c8_i32_26 = arith.constant 8 : i32
    %141 = arith.muli %c5_i32, %c8_i32_26 : i32
    %142 = tpu.assume_multiple %141, 8 : i32
    %143 = arith.index_cast %142 : i32 to index
    %c0_27 = arith.constant 0 : index
    %144 = vector.load %arg7[%143, %c0_27] : memref<64x128xf32, #tpu.memory_space<vmem>>, vector<8x128xf32>
    %145 = arith.truncf %138 : vector<8x32xf32> to vector<8x32xbf16>
    %cst_28 = arith.constant dense<0.000000e+00> : vector<8x128xf32>
    %146 = tpu.matmul %145, %13, %cst_28 {dimension_numbers = #tpu.dot_dimension_numbers<[1], [0], [0], [1], [0, 0, 1, 1], [], []>} : vector<8x32xbf16>, vector<32x128xbf16>, vector<8x128xf32> -> vector<8x128xf32>
    %147 = arith.addf %144, %146 : vector<8x128xf32>
    %148 = vector.broadcast %8 : vector<1x128xf32> to vector<8x128xf32>
    %149 = arith.mulf %147, %148 : vector<8x128xf32>
    %150 = math.tanh %149 : vector<8x128xf32>
    %151 = vector.broadcast %8 : vector<1x128xf32> to vector<8x128xf32>
    %152 = arith.mulf %150, %151 : vector<8x128xf32>
    %153 = vector.broadcast %11 : vector<1x128xf32> to vector<8x128xf32>
    %154 = arith.addf %152, %153 : vector<8x128xf32>
    %155 = vector.extract_strided_slice %154 {offsets = [0, 0], sizes = [8, 32], strides = [1, 1]} : vector<8x128xf32> to vector<8x32xf32>
    %156 = vector.extract_strided_slice %154 {offsets = [0, 32], sizes = [8, 32], strides = [1, 1]} : vector<8x128xf32> to vector<8x32xf32>
    %157 = vector.extract_strided_slice %154 {offsets = [0, 64], sizes = [8, 32], strides = [1, 1]} : vector<8x128xf32> to vector<8x32xf32>
    %158 = vector.extract_strided_slice %154 {offsets = [0, 96], sizes = [8, 32], strides = [1, 1]} : vector<8x128xf32> to vector<8x32xf32>
    %159 = arith.mulf %156, %136 : vector<8x32xf32>
    %160 = arith.mulf %155, %157 : vector<8x32xf32>
    %161 = arith.addf %159, %160 : vector<8x32xf32>
    %162 = math.tanh %161 : vector<8x32xf32>
    %163 = arith.mulf %158, %162 : vector<8x32xf32>
    %164 = arith.index_cast %142 : i32 to index
    %c0_29 = arith.constant 0 : index
    %165 = vector.load %arg9[%164, %c0_29] : memref<64x32xf32, #tpu.memory_space<vmem>>, vector<8x32xf32>
    tpu.vector_store %arg9[%164, %c0_29], %163 {strides = array<i32>} : memref<64x32xf32, #tpu.memory_space<vmem>>, vector<8x32xf32>,
    %c6_i32 = arith.constant 6 : i32
    %c8_i32_30 = arith.constant 8 : i32
    %166 = arith.muli %c6_i32, %c8_i32_30 : i32
    %167 = tpu.assume_multiple %166, 8 : i32
    %168 = arith.index_cast %167 : i32 to index
    %c0_31 = arith.constant 0 : index
    %169 = vector.load %arg7[%168, %c0_31] : memref<64x128xf32, #tpu.memory_space<vmem>>, vector<8x128xf32>
    %170 = arith.truncf %163 : vector<8x32xf32> to vector<8x32xbf16>
    %cst_32 = arith.constant dense<0.000000e+00> : vector<8x128xf32>
    %171 = tpu.matmul %170, %13, %cst_32 {dimension_numbers = #tpu.dot_dimension_numbers<[1], [0], [0], [1], [0, 0, 1, 1], [], []>} : vector<8x32xbf16>, vector<32x128xbf16>, vector<8x128xf32> -> vector<8x128xf32>
    %172 = arith.addf %169, %171 : vector<8x128xf32>
    %173 = vector.broadcast %8 : vector<1x128xf32> to vector<8x128xf32>
    %174 = arith.mulf %172, %173 : vector<8x128xf32>
    %175 = math.tanh %174 : vector<8x128xf32>
    %176 = vector.broadcast %8 : vector<1x128xf32> to vector<8x128xf32>
    %177 = arith.mulf %175, %176 : vector<8x128xf32>
    %178 = vector.broadcast %11 : vector<1x128xf32> to vector<8x128xf32>
    %179 = arith.addf %177, %178 : vector<8x128xf32>
    %180 = vector.extract_strided_slice %179 {offsets = [0, 0], sizes = [8, 32], strides = [1, 1]} : vector<8x128xf32> to vector<8x32xf32>
    %181 = vector.extract_strided_slice %179 {offsets = [0, 32], sizes = [8, 32], strides = [1, 1]} : vector<8x128xf32> to vector<8x32xf32>
    %182 = vector.extract_strided_slice %179 {offsets = [0, 64], sizes = [8, 32], strides = [1, 1]} : vector<8x128xf32> to vector<8x32xf32>
    %183 = vector.extract_strided_slice %179 {offsets = [0, 96], sizes = [8, 32], strides = [1, 1]} : vector<8x128xf32> to vector<8x32xf32>
    %184 = arith.mulf %181, %161 : vector<8x32xf32>
    %185 = arith.mulf %180, %182 : vector<8x32xf32>
    %186 = arith.addf %184, %185 : vector<8x32xf32>
    %187 = math.tanh %186 : vector<8x32xf32>
    %188 = arith.mulf %183, %187 : vector<8x32xf32>
    %189 = arith.index_cast %167 : i32 to index
    %c0_33 = arith.constant 0 : index
    %190 = vector.load %arg9[%189, %c0_33] : memref<64x32xf32, #tpu.memory_space<vmem>>, vector<8x32xf32>
    tpu.vector_store %arg9[%189, %c0_33], %188 {strides = array<i32>} : memref<64x32xf32, #tpu.memory_space<vmem>>, vector<8x32xf32>,
    %c7_i32 = arith.constant 7 : i32
    %c8_i32_34 = arith.constant 8 : i32
    %191 = arith.muli %c7_i32, %c8_i32_34 : i32
    %192 = tpu.assume_multiple %191, 8 : i32
    %193 = arith.index_cast %192 : i32 to index
    %c0_35 = arith.constant 0 : index
    %194 = vector.load %arg7[%193, %c0_35] : memref<64x128xf32, #tpu.memory_space<vmem>>, vector<8x128xf32>
    %195 = arith.truncf %188 : vector<8x32xf32> to vector<8x32xbf16>
    %cst_36 = arith.constant dense<0.000000e+00> : vector<8x128xf32>
    %196 = tpu.matmul %195, %13, %cst_36 {dimension_numbers = #tpu.dot_dimension_numbers<[1], [0], [0], [1], [0, 0, 1, 1], [], []>} : vector<8x32xbf16>, vector<32x128xbf16>, vector<8x128xf32> -> vector<8x128xf32>
    %197 = arith.addf %194, %196 : vector<8x128xf32>
    %198 = vector.broadcast %8 : vector<1x128xf32> to vector<8x128xf32>
    %199 = arith.mulf %197, %198 : vector<8x128xf32>
    %200 = math.tanh %199 : vector<8x128xf32>
    %201 = vector.broadcast %8 : vector<1x128xf32> to vector<8x128xf32>
    %202 = arith.mulf %200, %201 : vector<8x128xf32>
    %203 = vector.broadcast %11 : vector<1x128xf32> to vector<8x128xf32>
    %204 = arith.addf %202, %203 : vector<8x128xf32>
    %205 = vector.extract_strided_slice %204 {offsets = [0, 0], sizes = [8, 32], strides = [1, 1]} : vector<8x128xf32> to vector<8x32xf32>
    %206 = vector.extract_strided_slice %204 {offsets = [0, 32], sizes = [8, 32], strides = [1, 1]} : vector<8x128xf32> to vector<8x32xf32>
    %207 = vector.extract_strided_slice %204 {offsets = [0, 64], sizes = [8, 32], strides = [1, 1]} : vector<8x128xf32> to vector<8x32xf32>
    %208 = vector.extract_strided_slice %204 {offsets = [0, 96], sizes = [8, 32], strides = [1, 1]} : vector<8x128xf32> to vector<8x32xf32>
    %209 = arith.mulf %206, %186 : vector<8x32xf32>
    %210 = arith.mulf %205, %207 : vector<8x32xf32>
    %211 = arith.addf %209, %210 : vector<8x32xf32>
    %212 = math.tanh %211 : vector<8x32xf32>
    %213 = arith.mulf %208, %212 : vector<8x32xf32>
    %214 = arith.index_cast %192 : i32 to index
    %c0_37 = arith.constant 0 : index
    %215 = vector.load %arg9[%214, %c0_37] : memref<64x32xf32, #tpu.memory_space<vmem>>, vector<8x32xf32>
    tpu.vector_store %arg9[%214, %c0_37], %213 {strides = array<i32>} : memref<64x32xf32, #tpu.memory_space<vmem>>, vector<8x32xf32>,
    %c8_i32_38 = arith.constant 8 : i32
    %c0_39 = arith.constant 0 : index
    %c0_40 = arith.constant 0 : index
    %c0_41 = arith.constant 0 : index
    %216 = vector.load %arg5[%c0_39, %c0_40, %c0_41] : memref<2x8x32xf32, #tpu.memory_space<vmem>>, vector<1x8x32xf32>
    %217 = vector.shape_cast %216 : vector<1x8x32xf32> to vector<8x32xf32>
    %218 = vector.shape_cast %213 : vector<8x32xf32> to vector<1x8x32xf32>
    tpu.vector_store %arg5[%c0_39, %c0_40, %c0_41], %218 {strides = array<i32>} : memref<2x8x32xf32, #tpu.memory_space<vmem>>, vector<1x8x32xf32>,
    %c0_42 = arith.constant 0 : index
    %c0_43 = arith.constant 0 : index
    %c0_44 = arith.constant 0 : index
    %219 = vector.load %arg6[%c0_42, %c0_43, %c0_44] : memref<2x8x32xf32, #tpu.memory_space<vmem>>, vector<1x8x32xf32>
    %220 = vector.shape_cast %219 : vector<1x8x32xf32> to vector<8x32xf32>
    %221 = vector.shape_cast %211 : vector<8x32xf32> to vector<1x8x32xf32>
    tpu.vector_store %arg6[%c0_42, %c0_43, %c0_44], %221 {strides = array<i32>} : memref<2x8x32xf32, #tpu.memory_space<vmem>>, vector<1x8x32xf32>,
    %c0_45 = arith.constant 0 : index
    %c0_46 = arith.constant 0 : index
    %c0_47 = arith.constant 0 : index
    %222 = vector.load %arg2[%c0_45, %c0_46, %c0_47] : memref<1x32x128xbf16, #tpu.memory_space<vmem>>, vector<1x32x128xbf16>
    %223 = vector.shape_cast %222 : vector<1x32x128xbf16> to vector<32x128xbf16>
    %c0_48 = arith.constant 0 : index
    %c0_49 = arith.constant 0 : index
    %c0_50 = arith.constant 0 : index
    %224 = vector.load %arg3[%c0_48, %c0_49, %c0_50] : memref<1x1x128xf32, #tpu.memory_space<vmem>>, vector<1x1x128xf32>
    %225 = vector.shape_cast %224 : vector<1x1x128xf32> to vector<1x128xf32>
    %c0_51 = arith.constant 0 : index
    %c0_52 = arith.constant 0 : index
    %226 = vector.load %arg9[%c0_51, %c0_52] : memref<64x32xf32, #tpu.memory_space<vmem>>, vector<64x32xf32>
    %227 = arith.truncf %226 : vector<64x32xf32> to vector<64x32xbf16>
    %cst_53 = arith.constant dense<0.000000e+00> : vector<64x128xf32>
    %228 = tpu.matmul %227, %223, %cst_53 {dimension_numbers = #tpu.dot_dimension_numbers<[1], [0], [0], [1], [0, 0, 1, 1], [], []>} : vector<64x32xbf16>, vector<32x128xbf16>, vector<64x128xf32> -> vector<64x128xf32>
    %229 = vector.broadcast %225 : vector<1x128xf32> to vector<64x128xf32>
    %230 = arith.addf %228, %229 : vector<64x128xf32>
    %c0_54 = arith.constant 0 : index
    %c0_55 = arith.constant 0 : index
    %231 = vector.load %arg7[%c0_54, %c0_55] : memref<64x128xf32, #tpu.memory_space<vmem>>, vector<64x128xf32>
    tpu.vector_store %arg7[%c0_54, %c0_55], %230 {strides = array<i32>} : memref<64x128xf32, #tpu.memory_space<vmem>>, vector<64x128xf32>,
    %c1 = arith.constant 1 : index
    %c0_56 = arith.constant 0 : index
    %c0_57 = arith.constant 0 : index
    %232 = vector.load %arg4[%c1, %c0_56, %c0_57] : memref<2x32x128xbf16, #tpu.memory_space<vmem>>, vector<1x32x128xbf16>
    %233 = vector.shape_cast %232 : vector<1x32x128xbf16> to vector<32x128xbf16>
    %cst_58 = arith.constant 0.000000e+00 : f32
    %234 = vector.broadcast %cst_58 : f32 to vector<8x32xf32>
    %cst_59 = arith.constant 0.000000e+00 : f32
    %235 = vector.broadcast %cst_59 : f32 to vector<8x32xf32>
    %c0_i32_60 = arith.constant 0 : i32
    %c8_i32_61 = arith.constant 8 : i32
    %236 = arith.muli %c0_i32_60, %c8_i32_61 : i32
    %237 = tpu.assume_multiple %236, 8 : i32
    %238 = arith.index_cast %237 : i32 to index
    %c0_62 = arith.constant 0 : index
    %239 = vector.load %arg7[%238, %c0_62] : memref<64x128xf32, #tpu.memory_space<vmem>>, vector<8x128xf32>
    %240 = arith.truncf %234 : vector<8x32xf32> to vector<8x32xbf16>
    %cst_63 = arith.constant dense<0.000000e+00> : vector<8x128xf32>
    %241 = tpu.matmul %240, %233, %cst_63 {dimension_numbers = #tpu.dot_dimension_numbers<[1], [0], [0], [1], [0, 0, 1, 1], [], []>} : vector<8x32xbf16>, vector<32x128xbf16>, vector<8x128xf32> -> vector<8x128xf32>
    %242 = arith.addf %239, %241 : vector<8x128xf32>
    %243 = vector.broadcast %8 : vector<1x128xf32> to vector<8x128xf32>
    %244 = arith.mulf %242, %243 : vector<8x128xf32>
    %245 = math.tanh %244 : vector<8x128xf32>
    %246 = vector.broadcast %8 : vector<1x128xf32> to vector<8x128xf32>
    %247 = arith.mulf %245, %246 : vector<8x128xf32>
    %248 = vector.broadcast %11 : vector<1x128xf32> to vector<8x128xf32>
    %249 = arith.addf %247, %248 : vector<8x128xf32>
    %250 = vector.extract_strided_slice %249 {offsets = [0, 0], sizes = [8, 32], strides = [1, 1]} : vector<8x128xf32> to vector<8x32xf32>
    %251 = vector.extract_strided_slice %249 {offsets = [0, 32], sizes = [8, 32], strides = [1, 1]} : vector<8x128xf32> to vector<8x32xf32>
    %252 = vector.extract_strided_slice %249 {offsets = [0, 64], sizes = [8, 32], strides = [1, 1]} : vector<8x128xf32> to vector<8x32xf32>
    %253 = vector.extract_strided_slice %249 {offsets = [0, 96], sizes = [8, 32], strides = [1, 1]} : vector<8x128xf32> to vector<8x32xf32>
    %254 = arith.mulf %251, %235 : vector<8x32xf32>
    %255 = arith.mulf %250, %252 : vector<8x32xf32>
    %256 = arith.addf %254, %255 : vector<8x32xf32>
    %257 = math.tanh %256 : vector<8x32xf32>
    %258 = arith.mulf %253, %257 : vector<8x32xf32>
    %c1_i32_64 = arith.constant 1 : i32
    %c8_i32_65 = arith.constant 8 : i32
    %259 = arith.muli %c1_i32_64, %c8_i32_65 : i32
    %260 = tpu.assume_multiple %259, 8 : i32
    %261 = arith.index_cast %260 : i32 to index
    %c0_66 = arith.constant 0 : index
    %262 = vector.load %arg7[%261, %c0_66] : memref<64x128xf32, #tpu.memory_space<vmem>>, vector<8x128xf32>
    %263 = arith.truncf %258 : vector<8x32xf32> to vector<8x32xbf16>
    %cst_67 = arith.constant dense<0.000000e+00> : vector<8x128xf32>
    %264 = tpu.matmul %263, %233, %cst_67 {dimension_numbers = #tpu.dot_dimension_numbers<[1], [0], [0], [1], [0, 0, 1, 1], [], []>} : vector<8x32xbf16>, vector<32x128xbf16>, vector<8x128xf32> -> vector<8x128xf32>
    %265 = arith.addf %262, %264 : vector<8x128xf32>
    %266 = vector.broadcast %8 : vector<1x128xf32> to vector<8x128xf32>
    %267 = arith.mulf %265, %266 : vector<8x128xf32>
    %268 = math.tanh %267 : vector<8x128xf32>
    %269 = vector.broadcast %8 : vector<1x128xf32> to vector<8x128xf32>
    %270 = arith.mulf %268, %269 : vector<8x128xf32>
    %271 = vector.broadcast %11 : vector<1x128xf32> to vector<8x128xf32>
    %272 = arith.addf %270, %271 : vector<8x128xf32>
    %273 = vector.extract_strided_slice %272 {offsets = [0, 0], sizes = [8, 32], strides = [1, 1]} : vector<8x128xf32> to vector<8x32xf32>
    %274 = vector.extract_strided_slice %272 {offsets = [0, 32], sizes = [8, 32], strides = [1, 1]} : vector<8x128xf32> to vector<8x32xf32>
    %275 = vector.extract_strided_slice %272 {offsets = [0, 64], sizes = [8, 32], strides = [1, 1]} : vector<8x128xf32> to vector<8x32xf32>
    %276 = vector.extract_strided_slice %272 {offsets = [0, 96], sizes = [8, 32], strides = [1, 1]} : vector<8x128xf32> to vector<8x32xf32>
    %277 = arith.mulf %274, %256 : vector<8x32xf32>
    %278 = arith.mulf %273, %275 : vector<8x32xf32>
    %279 = arith.addf %277, %278 : vector<8x32xf32>
    %280 = math.tanh %279 : vector<8x32xf32>
    %281 = arith.mulf %276, %280 : vector<8x32xf32>
    %c2_i32_68 = arith.constant 2 : i32
    %c8_i32_69 = arith.constant 8 : i32
    %282 = arith.muli %c2_i32_68, %c8_i32_69 : i32
    %283 = tpu.assume_multiple %282, 8 : i32
    %284 = arith.index_cast %283 : i32 to index
    %c0_70 = arith.constant 0 : index
    %285 = vector.load %arg7[%284, %c0_70] : memref<64x128xf32, #tpu.memory_space<vmem>>, vector<8x128xf32>
    %286 = arith.truncf %281 : vector<8x32xf32> to vector<8x32xbf16>
    %cst_71 = arith.constant dense<0.000000e+00> : vector<8x128xf32>
    %287 = tpu.matmul %286, %233, %cst_71 {dimension_numbers = #tpu.dot_dimension_numbers<[1], [0], [0], [1], [0, 0, 1, 1], [], []>} : vector<8x32xbf16>, vector<32x128xbf16>, vector<8x128xf32> -> vector<8x128xf32>
    %288 = arith.addf %285, %287 : vector<8x128xf32>
    %289 = vector.broadcast %8 : vector<1x128xf32> to vector<8x128xf32>
    %290 = arith.mulf %288, %289 : vector<8x128xf32>
    %291 = math.tanh %290 : vector<8x128xf32>
    %292 = vector.broadcast %8 : vector<1x128xf32> to vector<8x128xf32>
    %293 = arith.mulf %291, %292 : vector<8x128xf32>
    %294 = vector.broadcast %11 : vector<1x128xf32> to vector<8x128xf32>
    %295 = arith.addf %293, %294 : vector<8x128xf32>
    %296 = vector.extract_strided_slice %295 {offsets = [0, 0], sizes = [8, 32], strides = [1, 1]} : vector<8x128xf32> to vector<8x32xf32>
    %297 = vector.extract_strided_slice %295 {offsets = [0, 32], sizes = [8, 32], strides = [1, 1]} : vector<8x128xf32> to vector<8x32xf32>
    %298 = vector.extract_strided_slice %295 {offsets = [0, 64], sizes = [8, 32], strides = [1, 1]} : vector<8x128xf32> to vector<8x32xf32>
    %299 = vector.extract_strided_slice %295 {offsets = [0, 96], sizes = [8, 32], strides = [1, 1]} : vector<8x128xf32> to vector<8x32xf32>
    %300 = arith.mulf %297, %279 : vector<8x32xf32>
    %301 = arith.mulf %296, %298 : vector<8x32xf32>
    %302 = arith.addf %300, %301 : vector<8x32xf32>
    %303 = math.tanh %302 : vector<8x32xf32>
    %304 = arith.mulf %299, %303 : vector<8x32xf32>
    %c3_i32_72 = arith.constant 3 : i32
    %c8_i32_73 = arith.constant 8 : i32
    %305 = arith.muli %c3_i32_72, %c8_i32_73 : i32
    %306 = tpu.assume_multiple %305, 8 : i32
    %307 = arith.index_cast %306 : i32 to index
    %c0_74 = arith.constant 0 : index
    %308 = vector.load %arg7[%307, %c0_74] : memref<64x128xf32, #tpu.memory_space<vmem>>, vector<8x128xf32>
    %309 = arith.truncf %304 : vector<8x32xf32> to vector<8x32xbf16>
    %cst_75 = arith.constant dense<0.000000e+00> : vector<8x128xf32>
    %310 = tpu.matmul %309, %233, %cst_75 {dimension_numbers = #tpu.dot_dimension_numbers<[1], [0], [0], [1], [0, 0, 1, 1], [], []>} : vector<8x32xbf16>, vector<32x128xbf16>, vector<8x128xf32> -> vector<8x128xf32>
    %311 = arith.addf %308, %310 : vector<8x128xf32>
    %312 = vector.broadcast %8 : vector<1x128xf32> to vector<8x128xf32>
    %313 = arith.mulf %311, %312 : vector<8x128xf32>
    %314 = math.tanh %313 : vector<8x128xf32>
    %315 = vector.broadcast %8 : vector<1x128xf32> to vector<8x128xf32>
    %316 = arith.mulf %314, %315 : vector<8x128xf32>
    %317 = vector.broadcast %11 : vector<1x128xf32> to vector<8x128xf32>
    %318 = arith.addf %316, %317 : vector<8x128xf32>
    %319 = vector.extract_strided_slice %318 {offsets = [0, 0], sizes = [8, 32], strides = [1, 1]} : vector<8x128xf32> to vector<8x32xf32>
    %320 = vector.extract_strided_slice %318 {offsets = [0, 32], sizes = [8, 32], strides = [1, 1]} : vector<8x128xf32> to vector<8x32xf32>
    %321 = vector.extract_strided_slice %318 {offsets = [0, 64], sizes = [8, 32], strides = [1, 1]} : vector<8x128xf32> to vector<8x32xf32>
    %322 = vector.extract_strided_slice %318 {offsets = [0, 96], sizes = [8, 32], strides = [1, 1]} : vector<8x128xf32> to vector<8x32xf32>
    %323 = arith.mulf %320, %302 : vector<8x32xf32>
    %324 = arith.mulf %319, %321 : vector<8x32xf32>
    %325 = arith.addf %323, %324 : vector<8x32xf32>
    %326 = math.tanh %325 : vector<8x32xf32>
    %327 = arith.mulf %322, %326 : vector<8x32xf32>
    %c4_i32_76 = arith.constant 4 : i32
    %c8_i32_77 = arith.constant 8 : i32
    %328 = arith.muli %c4_i32_76, %c8_i32_77 : i32
    %329 = tpu.assume_multiple %328, 8 : i32
    %330 = arith.index_cast %329 : i32 to index
    %c0_78 = arith.constant 0 : index
    %331 = vector.load %arg7[%330, %c0_78] : memref<64x128xf32, #tpu.memory_space<vmem>>, vector<8x128xf32>
    %332 = arith.truncf %327 : vector<8x32xf32> to vector<8x32xbf16>
    %cst_79 = arith.constant dense<0.000000e+00> : vector<8x128xf32>
    %333 = tpu.matmul %332, %233, %cst_79 {dimension_numbers = #tpu.dot_dimension_numbers<[1], [0], [0], [1], [0, 0, 1, 1], [], []>} : vector<8x32xbf16>, vector<32x128xbf16>, vector<8x128xf32> -> vector<8x128xf32>
    %334 = arith.addf %331, %333 : vector<8x128xf32>
    %335 = vector.broadcast %8 : vector<1x128xf32> to vector<8x128xf32>
    %336 = arith.mulf %334, %335 : vector<8x128xf32>
    %337 = math.tanh %336 : vector<8x128xf32>
    %338 = vector.broadcast %8 : vector<1x128xf32> to vector<8x128xf32>
    %339 = arith.mulf %337, %338 : vector<8x128xf32>
    %340 = vector.broadcast %11 : vector<1x128xf32> to vector<8x128xf32>
    %341 = arith.addf %339, %340 : vector<8x128xf32>
    %342 = vector.extract_strided_slice %341 {offsets = [0, 0], sizes = [8, 32], strides = [1, 1]} : vector<8x128xf32> to vector<8x32xf32>
    %343 = vector.extract_strided_slice %341 {offsets = [0, 32], sizes = [8, 32], strides = [1, 1]} : vector<8x128xf32> to vector<8x32xf32>
    %344 = vector.extract_strided_slice %341 {offsets = [0, 64], sizes = [8, 32], strides = [1, 1]} : vector<8x128xf32> to vector<8x32xf32>
    %345 = vector.extract_strided_slice %341 {offsets = [0, 96], sizes = [8, 32], strides = [1, 1]} : vector<8x128xf32> to vector<8x32xf32>
    %346 = arith.mulf %343, %325 : vector<8x32xf32>
    %347 = arith.mulf %342, %344 : vector<8x32xf32>
    %348 = arith.addf %346, %347 : vector<8x32xf32>
    %349 = math.tanh %348 : vector<8x32xf32>
    %350 = arith.mulf %345, %349 : vector<8x32xf32>
    %c5_i32_80 = arith.constant 5 : i32
    %c8_i32_81 = arith.constant 8 : i32
    %351 = arith.muli %c5_i32_80, %c8_i32_81 : i32
    %352 = tpu.assume_multiple %351, 8 : i32
    %353 = arith.index_cast %352 : i32 to index
    %c0_82 = arith.constant 0 : index
    %354 = vector.load %arg7[%353, %c0_82] : memref<64x128xf32, #tpu.memory_space<vmem>>, vector<8x128xf32>
    %355 = arith.truncf %350 : vector<8x32xf32> to vector<8x32xbf16>
    %cst_83 = arith.constant dense<0.000000e+00> : vector<8x128xf32>
    %356 = tpu.matmul %355, %233, %cst_83 {dimension_numbers = #tpu.dot_dimension_numbers<[1], [0], [0], [1], [0, 0, 1, 1], [], []>} : vector<8x32xbf16>, vector<32x128xbf16>, vector<8x128xf32> -> vector<8x128xf32>
    %357 = arith.addf %354, %356 : vector<8x128xf32>
    %358 = vector.broadcast %8 : vector<1x128xf32> to vector<8x128xf32>
    %359 = arith.mulf %357, %358 : vector<8x128xf32>
    %360 = math.tanh %359 : vector<8x128xf32>
    %361 = vector.broadcast %8 : vector<1x128xf32> to vector<8x128xf32>
    %362 = arith.mulf %360, %361 : vector<8x128xf32>
    %363 = vector.broadcast %11 : vector<1x128xf32> to vector<8x128xf32>
    %364 = arith.addf %362, %363 : vector<8x128xf32>
    %365 = vector.extract_strided_slice %364 {offsets = [0, 0], sizes = [8, 32], strides = [1, 1]} : vector<8x128xf32> to vector<8x32xf32>
    %366 = vector.extract_strided_slice %364 {offsets = [0, 32], sizes = [8, 32], strides = [1, 1]} : vector<8x128xf32> to vector<8x32xf32>
    %367 = vector.extract_strided_slice %364 {offsets = [0, 64], sizes = [8, 32], strides = [1, 1]} : vector<8x128xf32> to vector<8x32xf32>
    %368 = vector.extract_strided_slice %364 {offsets = [0, 96], sizes = [8, 32], strides = [1, 1]} : vector<8x128xf32> to vector<8x32xf32>
    %369 = arith.mulf %366, %348 : vector<8x32xf32>
    %370 = arith.mulf %365, %367 : vector<8x32xf32>
    %371 = arith.addf %369, %370 : vector<8x32xf32>
    %372 = math.tanh %371 : vector<8x32xf32>
    %373 = arith.mulf %368, %372 : vector<8x32xf32>
    %c6_i32_84 = arith.constant 6 : i32
    %c8_i32_85 = arith.constant 8 : i32
    %374 = arith.muli %c6_i32_84, %c8_i32_85 : i32
    %375 = tpu.assume_multiple %374, 8 : i32
    %376 = arith.index_cast %375 : i32 to index
    %c0_86 = arith.constant 0 : index
    %377 = vector.load %arg7[%376, %c0_86] : memref<64x128xf32, #tpu.memory_space<vmem>>, vector<8x128xf32>
    %378 = arith.truncf %373 : vector<8x32xf32> to vector<8x32xbf16>
    %cst_87 = arith.constant dense<0.000000e+00> : vector<8x128xf32>
    %379 = tpu.matmul %378, %233, %cst_87 {dimension_numbers = #tpu.dot_dimension_numbers<[1], [0], [0], [1], [0, 0, 1, 1], [], []>} : vector<8x32xbf16>, vector<32x128xbf16>, vector<8x128xf32> -> vector<8x128xf32>
    %380 = arith.addf %377, %379 : vector<8x128xf32>
    %381 = vector.broadcast %8 : vector<1x128xf32> to vector<8x128xf32>
    %382 = arith.mulf %380, %381 : vector<8x128xf32>
    %383 = math.tanh %382 : vector<8x128xf32>
    %384 = vector.broadcast %8 : vector<1x128xf32> to vector<8x128xf32>
    %385 = arith.mulf %383, %384 : vector<8x128xf32>
    %386 = vector.broadcast %11 : vector<1x128xf32> to vector<8x128xf32>
    %387 = arith.addf %385, %386 : vector<8x128xf32>
    %388 = vector.extract_strided_slice %387 {offsets = [0, 0], sizes = [8, 32], strides = [1, 1]} : vector<8x128xf32> to vector<8x32xf32>
    %389 = vector.extract_strided_slice %387 {offsets = [0, 32], sizes = [8, 32], strides = [1, 1]} : vector<8x128xf32> to vector<8x32xf32>
    %390 = vector.extract_strided_slice %387 {offsets = [0, 64], sizes = [8, 32], strides = [1, 1]} : vector<8x128xf32> to vector<8x32xf32>
    %391 = vector.extract_strided_slice %387 {offsets = [0, 96], sizes = [8, 32], strides = [1, 1]} : vector<8x128xf32> to vector<8x32xf32>
    %392 = arith.mulf %389, %371 : vector<8x32xf32>
    %393 = arith.mulf %388, %390 : vector<8x32xf32>
    %394 = arith.addf %392, %393 : vector<8x32xf32>
    %395 = math.tanh %394 : vector<8x32xf32>
    %396 = arith.mulf %391, %395 : vector<8x32xf32>
    %c7_i32_88 = arith.constant 7 : i32
    %c8_i32_89 = arith.constant 8 : i32
    %397 = arith.muli %c7_i32_88, %c8_i32_89 : i32
    %398 = tpu.assume_multiple %397, 8 : i32
    %399 = arith.index_cast %398 : i32 to index
    %c0_90 = arith.constant 0 : index
    %400 = vector.load %arg7[%399, %c0_90] : memref<64x128xf32, #tpu.memory_space<vmem>>, vector<8x128xf32>
    %401 = arith.truncf %396 : vector<8x32xf32> to vector<8x32xbf16>
    %cst_91 = arith.constant dense<0.000000e+00> : vector<8x128xf32>
    %402 = tpu.matmul %401, %233, %cst_91 {dimension_numbers = #tpu.dot_dimension_numbers<[1], [0], [0], [1], [0, 0, 1, 1], [], []>} : vector<8x32xbf16>, vector<32x128xbf16>, vector<8x128xf32> -> vector<8x128xf32>
    %403 = arith.addf %400, %402 : vector<8x128xf32>
    %404 = vector.broadcast %8 : vector<1x128xf32> to vector<8x128xf32>
    %405 = arith.mulf %403, %404 : vector<8x128xf32>
    %406 = math.tanh %405 : vector<8x128xf32>
    %407 = vector.broadcast %8 : vector<1x128xf32> to vector<8x128xf32>
    %408 = arith.mulf %406, %407 : vector<8x128xf32>
    %409 = vector.broadcast %11 : vector<1x128xf32> to vector<8x128xf32>
    %410 = arith.addf %408, %409 : vector<8x128xf32>
    %411 = vector.extract_strided_slice %410 {offsets = [0, 0], sizes = [8, 32], strides = [1, 1]} : vector<8x128xf32> to vector<8x32xf32>
    %412 = vector.extract_strided_slice %410 {offsets = [0, 32], sizes = [8, 32], strides = [1, 1]} : vector<8x128xf32> to vector<8x32xf32>
    %413 = vector.extract_strided_slice %410 {offsets = [0, 64], sizes = [8, 32], strides = [1, 1]} : vector<8x128xf32> to vector<8x32xf32>
    %414 = vector.extract_strided_slice %410 {offsets = [0, 96], sizes = [8, 32], strides = [1, 1]} : vector<8x128xf32> to vector<8x32xf32>
    %415 = arith.mulf %412, %394 : vector<8x32xf32>
    %416 = arith.mulf %411, %413 : vector<8x32xf32>
    %417 = arith.addf %415, %416 : vector<8x32xf32>
    %418 = math.tanh %417 : vector<8x32xf32>
    %419 = arith.mulf %414, %418 : vector<8x32xf32>
    %c8_i32_92 = arith.constant 8 : i32
    %c1_93 = arith.constant 1 : index
    %c0_94 = arith.constant 0 : index
    %c0_95 = arith.constant 0 : index
    %420 = vector.load %arg5[%c1_93, %c0_94, %c0_95] : memref<2x8x32xf32, #tpu.memory_space<vmem>>, vector<1x8x32xf32>
    %421 = vector.shape_cast %420 : vector<1x8x32xf32> to vector<8x32xf32>
    %422 = vector.shape_cast %419 : vector<8x32xf32> to vector<1x8x32xf32>
    tpu.vector_store %arg5[%c1_93, %c0_94, %c0_95], %422 {strides = array<i32>} : memref<2x8x32xf32, #tpu.memory_space<vmem>>, vector<1x8x32xf32>,
    %c1_96 = arith.constant 1 : index
    %c0_97 = arith.constant 0 : index
    %c0_98 = arith.constant 0 : index
    %423 = vector.load %arg6[%c1_96, %c0_97, %c0_98] : memref<2x8x32xf32, #tpu.memory_space<vmem>>, vector<1x8x32xf32>
    %424 = vector.shape_cast %423 : vector<1x8x32xf32> to vector<8x32xf32>
    %425 = vector.shape_cast %417 : vector<8x32xf32> to vector<1x8x32xf32>
    tpu.vector_store %arg6[%c1_96, %c0_97, %c0_98], %425 {strides = array<i32>} : memref<2x8x32xf32, #tpu.memory_space<vmem>>, vector<1x8x32xf32>,
    return
  }
  func.func @transform_1(%arg0: i32) -> (i32, i32, i32) {
    %c0_i32 = arith.constant 0 : i32
    %c0_i32_0 = arith.constant 0 : i32
    %c0_i32_1 = arith.constant 0 : i32
    %c0_i32_2 = arith.constant 0 : i32
    return %c0_i32, %c0_i32_0, %c0_i32_1 : i32, i32, i32
  }
  func.func @transform_2(%arg0: i32) -> (i32, i32, i32) {
    %c0_i32 = arith.constant 0 : i32
    %c0_i32_0 = arith.constant 0 : i32
    %c0_i32_1 = arith.constant 0 : i32
    %c0_i32_2 = arith.constant 0 : i32
    return %c0_i32, %c0_i32_0, %c0_i32_1 : i32, i32, i32
  }
  func.func @transform_3(%arg0: i32) -> (i32, i32, i32) {
    %c0_i32 = arith.constant 0 : i32
    %c0_i32_0 = arith.constant 0 : i32
    %c0_i32_1 = arith.constant 0 : i32
    %c0_i32_2 = arith.constant 0 : i32
    return %c0_i32, %c0_i32_0, %c0_i32_1 : i32, i32, i32
  }
  func.func @transform_4(%arg0: i32) -> (i32, i32, i32) {
    %c0_i32 = arith.constant 0 : i32
    %c0_i32_0 = arith.constant 0 : i32
    %c0_i32_1 = arith.constant 0 : i32
    %c0_i32_2 = arith.constant 0 : i32
    return %c0_i32, %c0_i32_0, %c0_i32_1 : i32, i32, i32
  }
  func.func @transform_5(%arg0: i32) -> (i32, i32, i32) {
    %c0_i32 = arith.constant 0 : i32
    %c0_i32_0 = arith.constant 0 : i32
    %c0_i32_1 = arith.constant 0 : i32
    %c0_i32_2 = arith.constant 0 : i32
    return %c0_i32, %c0_i32_0, %c0_i32_1 : i32, i32, i32
  }
}

</mosaic_0001>

<llo_original>
// kernel: tpu_custom_call.1
$region0: #{tpu_custom_call.1}
  #allocation0 [shape = 'u32[]', space=smem, size = 0x4, offset = 0x4, fixed_abs, tag = 'smem constant byte address 0x4 - core index']
  #allocation1 [shape = 'u32[144,128]{1,0:T(1,128)}', space=vmem, size = 0x12000, scoped, tag = 'internal scratch']
  #allocation2 [shape = 'f32[64,128]{1,0:T(8,128)}', space=vmem, size = 0x8000, scoped, tag = 'scratch operand']
  #allocation3 [shape = 's32[1]{0}', space=sflag, size = 0x4, scoped, tag = 'scratch operand']
  #allocation4 [shape = 'f32[64,32]{1,0:T(8,128)}', space=vmem, size = 0x8000, scoped, tag = 'scratch operand']
  #allocation13 [shape = 's32[]', space=sflag, size = 0x4, offset = 0, fixed_abs, tag = 'sflag constant byte address 0x0 - dummy sync flag']
  #allocation14 [shape = 's32[]', space=sflag, size = 0x4, offset = 0, fixed_abs, tag = 'sflag constant byte address 0x0 - dummy sync flag']
  #allocation15 [shape = 'u32[]', space=smem, size = 0x4, offset = 0x44, fixed_abs, tag = 'smem constant byte address 0x44 - assertion arg 0']
  #allocation16 [shape = 'u32[]', space=smem, size = 0x4, offset = 0x48, fixed_abs, tag = 'smem constant byte address 0x48 - assertion arg 1']
  %s0 = inlined_call_operand.hbm [shape: f32[64,128], index: 0, kind: input, shape index: {}]
  %s1 = inlined_call_operand.hbm [shape: bf16[1,32,128], index: 1, kind: input, shape index: {}]
  %s2 = inlined_call_operand.vmem [shape: f32[1,1,128], index: 2, kind: input, shape index: {}]
  %s3 = inlined_call_operand.hbm [shape: bf16[2,32,128], index: 3, kind: input, shape index: {}]
  %s4 = inlined_call_operand.hbm [shape: f32[2,8,32], index: 4, kind: output, shape index: {0}]
  %s5 = inlined_call_operand.hbm [shape: f32[2,8,32], index: 5, kind: output, shape index: {1}]
  %6 = xla_tuple %s4, %s5
  %s7 = sld [smem:[#allocation0]]
  $region42: #{tpu_custom_call.1} parent=0
    _
  %s9 = ssub.s32 1, %s7
  %s10 = scalar_select 0, %s9, %s7
  $region1: #{tpu_custom_call.1} parent=0
    #allocation5 [shape = 'u8[8192]{0}', space=vmem, size = 0x2000, scoped, tag = 'input window, operand 1, single buffered']
    #allocation6 [shape = 's32[1]{0}', space=sflag, size = 0x4, scoped, tag = 'scoped memory for tpu_custom_call.1']
    #allocation7 [shape = 's32[1]{0}', space=sflag, size = 0x4, scoped, tag = 'scoped memory for tpu_custom_call.1']
    #allocation8 [shape = 'u8[16384]{0}', space=vmem, size = 0x4000, scoped, tag = 'input window, operand 3, single buffered']
    #allocation9 [shape = 's32[1]{0}', space=sflag, size = 0x4, scoped, tag = 'scoped memory for tpu_custom_call.1']
    #allocation10 [shape = 'u8[8192]{0}', space=vmem, size = 0x2000, scoped, tag = 'output window, operand 0, single buffered']
    #allocation11 [shape = 'u8[8192]{0}', space=vmem, size = 0x2000, scoped, tag = 'output window, operand 1, single buffered']
    #allocation12 [shape = 's32[1]{0}', space=sflag, size = 0x4, scoped, tag = 'scoped memory for tpu_custom_call.1']
    %11 = vsyncpa [#allocation6], 0
    %12 = vsyncpa [#allocation9], 0
    %13 = vsyncpa [#allocation7], 0
    %14 = vsyncpa [#allocation12], 0
    // Predicated region
    $region2: #{tpu_custom_call.1} parent=1 // pred_check
      _
    $region3: #{tpu_custom_call.1} parent=1 // pred_check_branch
      %16 = sbr.rel (0) target = $region5
    $region4: #{tpu_custom_call.1} parent=1 // pred_region
      %s18 = ssub.s32 256, 256
      %19 = vsyncadd [#allocation6], %s18
      %s20 = sshll.u32 [#allocation5], 4
      %s21 = int_to_ptr.vmem [resolvable:$true] %s20
      %26 = dma.hbm_to_vmem [thread:$0]  %s1, 256, %s21, [#allocation6], 64, 64, 4
    $region5: #{tpu_custom_call.1} parent=1 // pred_fallthru
      _
    // Predicated region
    $region6: #{tpu_custom_call.1} parent=1 // pred_check
      _
    $region7: #{tpu_custom_call.1} parent=1 // pred_check_branch
      %28 = sbr.rel (0) target = $region9
    $region8: #{tpu_custom_call.1} parent=1 // pred_region
      _
    $region9: #{tpu_custom_call.1} parent=1 // pred_fallthru
      _
    // Predicated region
    $region10: #{tpu_custom_call.1} parent=1 // pred_check
      _
    $region11: #{tpu_custom_call.1} parent=1 // pred_check_branch
      %30 = sbr.rel (0) target = $region13
    $region12: #{tpu_custom_call.1} parent=1 // pred_region
      %s32 = ssub.s32 512, 512
      %33 = vsyncadd [#allocation9], %s32
      %s34 = sshll.u32 [#allocation8], 4
      %s35 = int_to_ptr.vmem [resolvable:$true] %s34
      %40 = dma.hbm_to_vmem [thread:$0]  %s3, 512, %s35, [#allocation9], 64, 64, 4
    $region13: #{tpu_custom_call.1} parent=1 // pred_fallthru
      _
    // Predicated region
    $region14: #{tpu_custom_call.1} parent=1 // pred_check
      _
    $region15: #{tpu_custom_call.1} parent=1 // pred_check_branch
      %42 = sbr.rel (0) target = $region17
    $region16: #{tpu_custom_call.1} parent=1 // pred_region
      %43 = dma.done [#allocation6], 256
    $region17: #{tpu_custom_call.1} parent=1 // pred_fallthru
      _
    // Predicated region
    $region18: #{tpu_custom_call.1} parent=1 // pred_check
      _
    $region19: #{tpu_custom_call.1} parent=1 // pred_check_branch
      %45 = sbr.rel (0) target = $region21
    $region20: #{tpu_custom_call.1} parent=1 // pred_region
      %46 = dma.done [#allocation9], 512
    $region21: #{tpu_custom_call.1} parent=1 // pred_fallthru
      _
    // Predicated region
    $region22: #{tpu_custom_call.1} parent=1 // pred_check
      _
    $region23: #{tpu_custom_call.1} parent=1 // pred_check_branch
      %49 = sbr.rel target = $region25
    $region24: #{tpu_custom_call.1} parent=1 // pred_region
      %50 = sst [smem:[#allocation15]] [#allocation14]
      %51 = sst [smem:[#allocation16]] [#allocation13]
    $region25: #{tpu_custom_call.1} parent=1 // pred_fallthru
      _
    %53 = shalt.err (0)
    %s55 = sshll.u32 [#allocation2], 4
    %s56 = int_to_ptr.vmem [resolvable:$true] %s55
    %58 = dma.hbm_to_vmem [thread:$0]  %s0, 1024, %s56, [#allocation3]
    %s59 = smul.u32 64, 1
    %s60 = sshll.u32 %s59, 4
    %61 = dma.done [#allocation3], %s60
    %v62 = vlaneseq
    %v63 = vand.u32 %v62, 127
    %vm64 = vcmp.ge.s32.totalorder %v63, 64
    %vm65 = vcmp.lt.s32.totalorder %v63, 96
    %vm66 = vmand %vm64, %vm65
    %v67 = vsel %vm66, 1.0, 0.5
    %v68 = vsel %vm66, 0.0, 0.5
    %v69 = vld [vmem:[#allocation8] sm:$0xf]
    %v70 = vld [vmem:[#allocation8 + $0x4] sm:$0xf]
    %v71 = vld [vmem:[#allocation8 + $0x8] sm:$0xf]
    %v72 = vld [vmem:[#allocation8 + $0xc] sm:$0xf]
    %v73 = vld [vmem:[#allocation2] sm:$0xff]
    %v78 = vunpack.c.l.b16 %v69
    %v79 = vunpack.c.l.b16 %v70
    %v80 = vunpack.c.l.b16 %v71
    %v81 = vunpack.c.l.b16 %v72
    %v82 = vpack.c.b16 %v79, %v78
    %v83 = vpack.c.b16 %v81, %v80
    %vm86 = vcmask 261120
    %v88 = vsel %vm86, 0, 0
    %90 = vmatprep.subr.bf16.mxu0 0
    %91 = vmatpush1.bf16.msra.mxu0 0
    %92 = vmatprep.subr.bf16.mxu0 0
    %93 = vmatpush1.bf16.msra.mxu0 0
    %94 = vmatprep.subr.bf16.mxu0 0
    %95 = vmatpush1.bf16.msra.mxu0 0
    %96 = vmatprep.subr.bf16.mxu0 0
    %97 = vmatpush1.bf16.msra.mxu0 0
    %98 = vmatprep.subr.bf16.mxu0 0
    %99 = vmatpush1.bf16.msra.mxu0 0
    %100 = vmatprep.subr.bf16.mxu0 0
    %101 = vmatpush1.bf16.msra.mxu0 0
    %102 = vmatprep.subr.bf16.mxu0 0
    %103 = vmatpush1.bf16.msra.mxu0 %v83
    %104 = vmatprep.subr.bf16.mxu0 0
    %105 = vmatpush1.bf16.msra.mxu0 %v82
    %106 = vmatprep.subr.bf16.mxu0 0
    %107 = vmatpush2.bf16.msra.mxu0 0
    %108 = vmatprep.subr.bf16.mxu0 0
    %109 = vmatpush2.bf16.msra.mxu0 0
    %110 = vmatprep.subr.bf16.mxu0 0
    %111 = vmatpush2.bf16.msra.mxu0 0
    %112 = vmatprep.subr.bf16.mxu0 0
    %113 = vmatpush2.bf16.msra.mxu0 0
    %114 = vmatprep.subr.bf16.mxu0 0
    %115 = vmatpush2.bf16.msra.mxu0 0
    %116 = vmatprep.subr.bf16.mxu0 0
    %117 = vmatpush2.bf16.msra.mxu0 0
    %118 = vmatprep.subr.bf16.mxu0 0
    %119 = vmatpush2.bf16.msra.mxu0 0
    %120 = vmatprep.subr.bf16.mxu0 0
    %121 = vmatpush2.bf16.msra.mxu0 0
    %122 = vmatprep.mubr.bf16.mxu0 0
    %123 = vmatmul.mubr.bf16.gmra.mxu0 %v88
    %v124 = vpop.f32.mrf.mxu0
    %v125 = vadd.f32 0.0, %v124
    %v126 = vpop.f32.mrf.mxu0
    %v127 = vpop.f32.mrf.mxu0
    %v128 = vpop.f32.mrf.mxu0
    %129 = vdwg.mxu0
    %v130 = vadd.f32 %v73, %v125
    %v131 = vmul.f32 %v130, %v67
    %v132 = vtanh.pop %v131
    %v133 = vmul.f32 %v132, %v67
    %v134 = vadd.f32 %v133, %v68
    %v135 = vmul.f32 %v134, 0.0
    %137 = vrot.lane.b32.xlu0 %v134, 64
    %v138 = vpop.permute.xlu0 %137
    %v140 = vmul.f32 %v134, %v138
    %142 = vrot.lane.b32.xlu0 %v140, 32
    %v143 = vpop.permute.xlu0 %142
    %v145 = vadd.f32 %v135, %v143
    %v146 = vtanh.pop %v145
    %148 = vrot.lane.b32.xlu0 %v146, 64
    %v149 = vpop.permute.xlu0 %148
    %v151 = vmul.f32 %v134, %v149
    %153 = vrot.lane.b32.xlu0 %v151, 32
    %v154 = vpop.permute.xlu0 %153
    %156 = vst.msk [vmem:[#allocation4] sm:$0xff] %vm86, %v154
    %s157 = scalar_lea.vmem [#allocation2], 8
    %v158 = vld [vmem:[%s157] sm:$0xff]
    %v159 = vpack.c.bf16 %v151, %v151
    %161 = vrot.lane.b32.xlu0 %v159, 32
    %v162 = vpop.permute.xlu0 %161
    %v164 = vsel %vm86, %v162, 0
    %166 = vmatprep.subr.bf16.mxu0 0
    %167 = vmatpush1.bf16.msra.mxu0 0
    %168 = vmatprep.subr.bf16.mxu0 0
    %169 = vmatpush1.bf16.msra.mxu0 0
    %170 = vmatprep.subr.bf16.mxu0 0
    %171 = vmatpush1.bf16.msra.mxu0 0
    %172 = vmatprep.subr.bf16.mxu0 0
    %173 = vmatpush1.bf16.msra.mxu0 0
    %174 = vmatprep.subr.bf16.mxu0 0
    %175 = vmatpush1.bf16.msra.mxu0 0
    %176 = vmatprep.subr.bf16.mxu0 0
    %177 = vmatpush1.bf16.msra.mxu0 0
    %178 = vmatprep.subr.bf16.mxu0 0
    %179 = vmatpush1.bf16.msra.mxu0 %v83
    %180 = vmatprep.subr.bf16.mxu0 0
    %181 = vmatpush1.bf16.msra.mxu0 %v82
    %182 = vmatprep.subr.bf16.mxu0 0
    %183 = vmatpush2.bf16.msra.mxu0 0
    %184 = vmatprep.subr.bf16.mxu0 0
    %185 = vmatpush2.bf16.msra.mxu0 0
    %186 = vmatprep.subr.bf16.mxu0 0
    %187 = vmatpush2.bf16.msra.mxu0 0
    %188 = vmatprep.subr.bf16.mxu0 0
    %189 = vmatpush2.bf16.msra.mxu0 0
    %190 = vmatprep.subr.bf16.mxu0 0
    %191 = vmatpush2.bf16.msra.mxu0 0
    %192 = vmatprep.subr.bf16.mxu0 0
    %193 = vmatpush2.bf16.msra.mxu0 0
    %194 = vmatprep.subr.bf16.mxu0 0
    %195 = vmatpush2.bf16.msra.mxu0 0
    %196 = vmatprep.subr.bf16.mxu0 0
    %197 = vmatpush2.bf16.msra.mxu0 0
    %198 = vmatprep.mubr.bf16.mxu0 0
    %199 = vmatmul.mubr.bf16.gmra.mxu0 %v164
    %v200 = vpop.f32.mrf.mxu0
    %v201 = vadd.f32 0.0, %v200
    %v202 = vpop.f32.mrf.mxu0
    %v203 = vpop.f32.mrf.mxu0
    %v204 = vpop.f32.mrf.mxu0
    %205 = vdwg.mxu0
    %v206 = vadd.f32 %v158, %v201
    %v207 = vmul.f32 %v206, %v67
    %v208 = vtanh.pop %v207
    %v209 = vmul.f32 %v208, %v67
    %v210 = vadd.f32 %v209, %v68
    %v211 = vmul.f32 %v210, %v145
    %213 = vrot.lane.b32.xlu0 %v210, 64
    %v214 = vpop.permute.xlu0 %213
    %v216 = vmul.f32 %v210, %v214
    %218 = vrot.lane.b32.xlu0 %v216, 32
    %v219 = vpop.permute.xlu0 %218
    %v221 = vadd.f32 %v211, %v219
    %v222 = vtanh.pop %v221
    %224 = vrot.lane.b32.xlu0 %v222, 64
    %v225 = vpop.permute.xlu0 %224
    %v227 = vmul.f32 %v210, %v225
    %229 = vrot.lane.b32.xlu0 %v227, 32
    %v230 = vpop.permute.xlu0 %229
    %s232 = scalar_lea.vmem [#allocation4], 8
    %233 = vst.msk [vmem:[%s232] sm:$0xff] %vm86, %v230
    %s234 = scalar_lea.vmem [#allocation2], 16
    %v235 = vld [vmem:[%s234] sm:$0xff]
    %v236 = vpack.c.bf16 %v227, %v227
    %238 = vrot.lane.b32.xlu0 %v236, 32
    %v239 = vpop.permute.xlu0 %238
    %v241 = vsel %vm86, %v239, 0
    %243 = vmatprep.subr.bf16.mxu0 0
    %244 = vmatpush1.bf16.msra.mxu0 0
    %245 = vmatprep.subr.bf16.mxu0 0
    %246 = vmatpush1.bf16.msra.mxu0 0
    %247 = vmatprep.subr.bf16.mxu0 0
    %248 = vmatpush1.bf16.msra.mxu0 0
    %249 = vmatprep.subr.bf16.mxu0 0
    %250 = vmatpush1.bf16.msra.mxu0 0
    %251 = vmatprep.subr.bf16.mxu0 0
    %252 = vmatpush1.bf16.msra.mxu0 0
    %253 = vmatprep.subr.bf16.mxu0 0
    %254 = vmatpush1.bf16.msra.mxu0 0
    %255 = vmatprep.subr.bf16.mxu0 0
    %256 = vmatpush1.bf16.msra.mxu0 %v83
    %257 = vmatprep.subr.bf16.mxu0 0
    %258 = vmatpush1.bf16.msra.mxu0 %v82
    %259 = vmatprep.subr.bf16.mxu0 0
    %260 = vmatpush2.bf16.msra.mxu0 0
    %261 = vmatprep.subr.bf16.mxu0 0
    %262 = vmatpush2.bf16.msra.mxu0 0
    %263 = vmatprep.subr.bf16.mxu0 0
    %264 = vmatpush2.bf16.msra.mxu0 0
    %265 = vmatprep.subr.bf16.mxu0 0
    %266 = vmatpush2.bf16.msra.mxu0 0
    %267 = vmatprep.subr.bf16.mxu0 0
    %268 = vmatpush2.bf16.msra.mxu0 0
    %269 = vmatprep.subr.bf16.mxu0 0
    %270 = vmatpush2.bf16.msra.mxu0 0
    %271 = vmatprep.subr.bf16.mxu0 0
    %272 = vmatpush2.bf16.msra.mxu0 0
    %273 = vmatprep.subr.bf16.mxu0 0
    %274 = vmatpush2.bf16.msra.mxu0 0
    %275 = vmatprep.mubr.bf16.mxu0 0
    %276 = vmatmul.mubr.bf16.gmra.mxu0 %v241
    %v277 = vpop.f32.mrf.mxu0
    %v278 = vadd.f32 0.0, %v277
    %v279 = vpop.f32.mrf.mxu0
    %v280 = vpop.f32.mrf.mxu0
    %v281 = vpop.f32.mrf.mxu0
    %282 = vdwg.mxu0
    %v283 = vadd.f32 %v235, %v278
    %v284 = vmul.f32 %v283, %v67
    %v285 = vtanh.pop %v284
    %v286 = vmul.f32 %v285, %v67
    %v287 = vadd.f32 %v286, %v68
    %v288 = vmul.f32 %v287, %v221
    %290 = vrot.lane.b32.xlu0 %v287, 64
    %v291 = vpop.permute.xlu0 %290
    %v293 = vmul.f32 %v287, %v291
    %295 = vrot.lane.b32.xlu0 %v293, 32
    %v296 = vpop.permute.xlu0 %295
    %v298 = vadd.f32 %v288, %v296
    %v299 = vtanh.pop %v298
    %301 = vrot.lane.b32.xlu0 %v299, 64
    %v302 = vpop.permute.xlu0 %301
    %v304 = vmul.f32 %v287, %v302
    %306 = vrot.lane.b32.xlu0 %v304, 32
    %v307 = vpop.permute.xlu0 %306
    %s309 = scalar_lea.vmem [#allocation4], 16
    %310 = vst.msk [vmem:[%s309] sm:$0xff] %vm86, %v307
    %s311 = scalar_lea.vmem [#allocation2], 24
    %v312 = vld [vmem:[%s311] sm:$0xff]
    %v313 = vpack.c.bf16 %v304, %v304
    %315 = vrot.lane.b32.xlu0 %v313, 32
    %v316 = vpop.permute.xlu0 %315
    %v318 = vsel %vm86, %v316, 0
    %320 = vmatprep.subr.bf16.mxu0 0
    %321 = vmatpush1.bf16.msra.mxu0 0
    %322 = vmatprep.subr.bf16.mxu0 0
    %323 = vmatpush1.bf16.msra.mxu0 0
    %324 = vmatprep.subr.bf16.mxu0 0
    %325 = vmatpush1.bf16.msra.mxu0 0
    %326 = vmatprep.subr.bf16.mxu0 0
    %327 = vmatpush1.bf16.msra.mxu0 0
    %328 = vmatprep.subr.bf16.mxu0 0
    %329 = vmatpush1.bf16.msra.mxu0 0
    %330 = vmatprep.subr.bf16.mxu0 0
    %331 = vmatpush1.bf16.msra.mxu0 0
    %332 = vmatprep.subr.bf16.mxu0 0
    %333 = vmatpush1.bf16.msra.mxu0 %v83
    %334 = vmatprep.subr.bf16.mxu0 0
    %335 = vmatpush1.bf16.msra.mxu0 %v82
    %336 = vmatprep.subr.bf16.mxu0 0
    %337 = vmatpush2.bf16.msra.mxu0 0
    %338 = vmatprep.subr.bf16.mxu0 0
    %339 = vmatpush2.bf16.msra.mxu0 0
    %340 = vmatprep.subr.bf16.mxu0 0
    %341 = vmatpush2.bf16.msra.mxu0 0
    %342 = vmatprep.subr.bf16.mxu0 0
    %343 = vmatpush2.bf16.msra.mxu0 0
    %344 = vmatprep.subr.bf16.mxu0 0
    %345 = vmatpush2.bf16.msra.mxu0 0
    %346 = vmatprep.subr.bf16.mxu0 0
    %347 = vmatpush2.bf16.msra.mxu0 0
    %348 = vmatprep.subr.bf16.mxu0 0
    %349 = vmatpush2.bf16.msra.mxu0 0
    %350 = vmatprep.subr.bf16.mxu0 0
    %351 = vmatpush2.bf16.msra.mxu0 0
    %352 = vmatprep.mubr.bf16.mxu0 0
    %353 = vmatmul.mubr.bf16.gmra.mxu0 %v318
    %v354 = vpop.f32.mrf.mxu0
    %v355 = vadd.f32 0.0, %v354
    %v356 = vpop.f32.mrf.mxu0
    %v357 = vpop.f32.mrf.mxu0
    %v358 = vpop.f32.mrf.mxu0
    %359 = vdwg.mxu0
    %v360 = vadd.f32 %v312, %v355
    %v361 = vmul.f32 %v360, %v67
    %v362 = vtanh.pop %v361
    %v363 = vmul.f32 %v362, %v67
    %v364 = vadd.f32 %v363, %v68
    %v365 = vmul.f32 %v364, %v298
    %367 = vrot.lane.b32.xlu0 %v364, 64
    %v368 = vpop.permute.xlu0 %367
    %v370 = vmul.f32 %v364, %v368
    %372 = vrot.lane.b32.xlu0 %v370, 32
    %v373 = vpop.permute.xlu0 %372
    %v375 = vadd.f32 %v365, %v373
    %v376 = vtanh.pop %v375
    %378 = vrot.lane.b32.xlu0 %v376, 64
    %v379 = vpop.permute.xlu0 %378
    %v381 = vmul.f32 %v364, %v379
    %383 = vrot.lane.b32.xlu0 %v381, 32
    %v384 = vpop.permute.xlu0 %383
    %s386 = scalar_lea.vmem [#allocation4], 24
    %387 = vst.msk [vmem:[%s386] sm:$0xff] %vm86, %v384
    %s388 = scalar_lea.vmem [#allocation2], 32
    %v389 = vld [vmem:[%s388] sm:$0xff]
    %v390 = vpack.c.bf16 %v381, %v381
    %392 = vrot.lane.b32.xlu0 %v390, 32
    %v393 = vpop.permute.xlu0 %392
    %v395 = vsel %vm86, %v393, 0
    %397 = vmatprep.subr.bf16.mxu0 0
    %398 = vmatpush1.bf16.msra.mxu0 0
    %399 = vmatprep.subr.bf16.mxu0 0
    %400 = vmatpush1.bf16.msra.mxu0 0
    %401 = vmatprep.subr.bf16.mxu0 0
    %402 = vmatpush1.bf16.msra.mxu0 0
    %403 = vmatprep.subr.bf16.mxu0 0
    %404 = vmatpush1.bf16.msra.mxu0 0
    %405 = vmatprep.subr.bf16.mxu0 0
    %406 = vmatpush1.bf16.msra.mxu0 0
    %407 = vmatprep.subr.bf16.mxu0 0
    %408 = vmatpush1.bf16.msra.mxu0 0
    %409 = vmatprep.subr.bf16.mxu0 0
    %410 = vmatpush1.bf16.msra.mxu0 %v83
    %411 = vmatprep.subr.bf16.mxu0 0
    %412 = vmatpush1.bf16.msra.mxu0 %v82
    %413 = vmatprep.subr.bf16.mxu0 0
    %414 = vmatpush2.bf16.msra.mxu0 0
    %415 = vmatprep.subr.bf16.mxu0 0
    %416 = vmatpush2.bf16.msra.mxu0 0
    %417 = vmatprep.subr.bf16.mxu0 0
    %418 = vmatpush2.bf16.msra.mxu0 0
    %419 = vmatprep.subr.bf16.mxu0 0
    %420 = vmatpush2.bf16.msra.mxu0 0
    %421 = vmatprep.subr.bf16.mxu0 0
    %422 = vmatpush2.bf16.msra.mxu0 0
    %423 = vmatprep.subr.bf16.mxu0 0
    %424 = vmatpush2.bf16.msra.mxu0 0
    %425 = vmatprep.subr.bf16.mxu0 0
    %426 = vmatpush2.bf16.msra.mxu0 0
    %427 = vmatprep.subr.bf16.mxu0 0
    %428 = vmatpush2.bf16.msra.mxu0 0
    %429 = vmatprep.mubr.bf16.mxu0 0
    %430 = vmatmul.mubr.bf16.gmra.mxu0 %v395
    %v431 = vpop.f32.mrf.mxu0
    %v432 = vadd.f32 0.0, %v431
    %v433 = vpop.f32.mrf.mxu0
    %v434 = vpop.f32.mrf.mxu0
    %v435 = vpop.f32.mrf.mxu0
    %436 = vdwg.mxu0
    %v437 = vadd.f32 %v389, %v432
    %v438 = vmul.f32 %v437, %v67
    %v439 = vtanh.pop %v438
    %v440 = vmul.f32 %v439, %v67
    %v441 = vadd.f32 %v440, %v68
    %v442 = vmul.f32 %v441, %v375
    %444 = vrot.lane.b32.xlu0 %v441, 64
    %v445 = vpop.permute.xlu0 %444
    %v447 = vmul.f32 %v441, %v445
    %449 = vrot.lane.b32.xlu0 %v447, 32
    %v450 = vpop.permute.xlu0 %449
    %v452 = vadd.f32 %v442, %v450
    %v453 = vtanh.pop %v452
    %455 = vrot.lane.b32.xlu0 %v453, 64
    %v456 = vpop.permute.xlu0 %455
    %v458 = vmul.f32 %v441, %v456
    %460 = vrot.lane.b32.xlu0 %v458, 32
    %v461 = vpop.permute.xlu0 %460
    %s463 = scalar_lea.vmem [#allocation4], 32
    %464 = vst.msk [vmem:[%s463] sm:$0xff] %vm86, %v461
    %s465 = scalar_lea.vmem [#allocation2], 40
    %v466 = vld [vmem:[%s465] sm:$0xff]
    %v467 = vpack.c.bf16 %v458, %v458
    %469 = vrot.lane.b32.xlu0 %v467, 32
    %v470 = vpop.permute.xlu0 %469
    %v472 = vsel %vm86, %v470, 0
    %474 = vmatprep.subr.bf16.mxu0 0
    %475 = vmatpush1.bf16.msra.mxu0 0
    %476 = vmatprep.subr.bf16.mxu0 0
    %477 = vmatpush1.bf16.msra.mxu0 0
    %478 = vmatprep.subr.bf16.mxu0 0
    %479 = vmatpush1.bf16.msra.mxu0 0
    %480 = vmatprep.subr.bf16.mxu0 0
    %481 = vmatpush1.bf16.msra.mxu0 0
    %482 = vmatprep.subr.bf16.mxu0 0
    %483 = vmatpush1.bf16.msra.mxu0 0
    %484 = vmatprep.subr.bf16.mxu0 0
    %485 = vmatpush1.bf16.msra.mxu0 0
    %486 = vmatprep.subr.bf16.mxu0 0
    %487 = vmatpush1.bf16.msra.mxu0 %v83
    %488 = vmatprep.subr.bf16.mxu0 0
    %489 = vmatpush1.bf16.msra.mxu0 %v82
    %490 = vmatprep.subr.bf16.mxu0 0
    %491 = vmatpush2.bf16.msra.mxu0 0
    %492 = vmatprep.subr.bf16.mxu0 0
    %493 = vmatpush2.bf16.msra.mxu0 0
    %494 = vmatprep.subr.bf16.mxu0 0
    %495 = vmatpush2.bf16.msra.mxu0 0
    %496 = vmatprep.subr.bf16.mxu0 0
    %497 = vmatpush2.bf16.msra.mxu0 0
    %498 = vmatprep.subr.bf16.mxu0 0
    %499 = vmatpush2.bf16.msra.mxu0 0
    %500 = vmatprep.subr.bf16.mxu0 0
    %501 = vmatpush2.bf16.msra.mxu0 0
    %502 = vmatprep.subr.bf16.mxu0 0
    %503 = vmatpush2.bf16.msra.mxu0 0
    %504 = vmatprep.subr.bf16.mxu0 0
    %505 = vmatpush2.bf16.msra.mxu0 0
    %506 = vmatprep.mubr.bf16.mxu0 0
    %507 = vmatmul.mubr.bf16.gmra.mxu0 %v472
    %v508 = vpop.f32.mrf.mxu0
    %v509 = vadd.f32 0.0, %v508
    %v510 = vpop.f32.mrf.mxu0
    %v511 = vpop.f32.mrf.mxu0
    %v512 = vpop.f32.mrf.mxu0
    %513 = vdwg.mxu0
    %v514 = vadd.f32 %v466, %v509
    %v515 = vmul.f32 %v514, %v67
    %v516 = vtanh.pop %v515
    %v517 = vmul.f32 %v516, %v67
    %v518 = vadd.f32 %v517, %v68
    %v519 = vmul.f32 %v518, %v452
    %521 = vrot.lane.b32.xlu0 %v518, 64
    %v522 = vpop.permute.xlu0 %521
    %v524 = vmul.f32 %v518, %v522
    %526 = vrot.lane.b32.xlu0 %v524, 32
    %v527 = vpop.permute.xlu0 %526
    %v529 = vadd.f32 %v519, %v527
    %v530 = vtanh.pop %v529
    %532 = vrot.lane.b32.xlu0 %v530, 64
    %v533 = vpop.permute.xlu0 %532
    %v535 = vmul.f32 %v518, %v533
    %537 = vrot.lane.b32.xlu0 %v535, 32
    %v538 = vpop.permute.xlu0 %537
    %s540 = scalar_lea.vmem [#allocation4], 40
    %541 = vst.msk [vmem:[%s540] sm:$0xff] %vm86, %v538
    %s542 = scalar_lea.vmem [#allocation2], 48
    %v543 = vld [vmem:[%s542] sm:$0xff]
    %v544 = vpack.c.bf16 %v535, %v535
    %546 = vrot.lane.b32.xlu0 %v544, 32
    %v547 = vpop.permute.xlu0 %546
    %v549 = vsel %vm86, %v547, 0
    %551 = vmatprep.subr.bf16.mxu0 0
    %552 = vmatpush1.bf16.msra.mxu0 0
    %553 = vmatprep.subr.bf16.mxu0 0
    %554 = vmatpush1.bf16.msra.mxu0 0
    %555 = vmatprep.subr.bf16.mxu0 0
    %556 = vmatpush1.bf16.msra.mxu0 0
    %557 = vmatprep.subr.bf16.mxu0 0
    %558 = vmatpush1.bf16.msra.mxu0 0
    %559 = vmatprep.subr.bf16.mxu0 0
    %560 = vmatpush1.bf16.msra.mxu0 0
    %561 = vmatprep.subr.bf16.mxu0 0
    %562 = vmatpush1.bf16.msra.mxu0 0
    %563 = vmatprep.subr.bf16.mxu0 0
    %564 = vmatpush1.bf16.msra.mxu0 %v83
    %565 = vmatprep.subr.bf16.mxu0 0
    %566 = vmatpush1.bf16.msra.mxu0 %v82
    %567 = vmatprep.subr.bf16.mxu0 0
    %568 = vmatpush2.bf16.msra.mxu0 0
    %569 = vmatprep.subr.bf16.mxu0 0
    %570 = vmatpush2.bf16.msra.mxu0 0
    %571 = vmatprep.subr.bf16.mxu0 0
    %572 = vmatpush2.bf16.msra.mxu0 0
    %573 = vmatprep.subr.bf16.mxu0 0
    %574 = vmatpush2.bf16.msra.mxu0 0
    %575 = vmatprep.subr.bf16.mxu0 0
    %576 = vmatpush2.bf16.msra.mxu0 0
    %577 = vmatprep.subr.bf16.mxu0 0
    %578 = vmatpush2.bf16.msra.mxu0 0
    %579 = vmatprep.subr.bf16.mxu0 0
    %580 = vmatpush2.bf16.msra.mxu0 0
    %581 = vmatprep.subr.bf16.mxu0 0
    %582 = vmatpush2.bf16.msra.mxu0 0
    %583 = vmatprep.mubr.bf16.mxu0 0
    %584 = vmatmul.mubr.bf16.gmra.mxu0 %v549
    %v585 = vpop.f32.mrf.mxu0
    %v586 = vadd.f32 0.0, %v585
    %v587 = vpop.f32.mrf.mxu0
    %v588 = vpop.f32.mrf.mxu0
    %v589 = vpop.f32.mrf.mxu0
    %590 = vdwg.mxu0
    %v591 = vadd.f32 %v543, %v586
    %v592 = vmul.f32 %v591, %v67
    %v593 = vtanh.pop %v592
    %v594 = vmul.f32 %v593, %v67
    %v595 = vadd.f32 %v594, %v68
    %v596 = vmul.f32 %v595, %v529
    %598 = vrot.lane.b32.xlu0 %v595, 64
    %v599 = vpop.permute.xlu0 %598
    %v601 = vmul.f32 %v595, %v599
    %603 = vrot.lane.b32.xlu0 %v601, 32
    %v604 = vpop.permute.xlu0 %603
    %v606 = vadd.f32 %v596, %v604
    %v607 = vtanh.pop %v606
    %609 = vrot.lane.b32.xlu0 %v607, 64
    %v610 = vpop.permute.xlu0 %609
    %v612 = vmul.f32 %v595, %v610
    %614 = vrot.lane.b32.xlu0 %v612, 32
    %v615 = vpop.permute.xlu0 %614
    %s617 = scalar_lea.vmem [#allocation4], 48
    %618 = vst.msk [vmem:[%s617] sm:$0xff] %vm86, %v615
    %s619 = scalar_lea.vmem [#allocation2], 56
    %v620 = vld [vmem:[%s619] sm:$0xff]
    %v621 = vpack.c.bf16 %v612, %v612
    %623 = vrot.lane.b32.xlu0 %v621, 32
    %v624 = vpop.permute.xlu0 %623
    %v626 = vsel %vm86, %v624, 0
    %628 = vmatprep.subr.bf16.mxu0 0
    %629 = vmatpush1.bf16.msra.mxu0 0
    %630 = vmatprep.subr.bf16.mxu0 0
    %631 = vmatpush1.bf16.msra.mxu0 0
    %632 = vmatprep.subr.bf16.mxu0 0
    %633 = vmatpush1.bf16.msra.mxu0 0
    %634 = vmatprep.subr.bf16.mxu0 0
    %635 = vmatpush1.bf16.msra.mxu0 0
    %636 = vmatprep.subr.bf16.mxu0 0
    %637 = vmatpush1.bf16.msra.mxu0 0
    %638 = vmatprep.subr.bf16.mxu0 0
    %639 = vmatpush1.bf16.msra.mxu0 0
    %640 = vmatprep.subr.bf16.mxu0 0
    %641 = vmatpush1.bf16.msra.mxu0 %v83
    %642 = vmatprep.subr.bf16.mxu0 0
    %643 = vmatpush1.bf16.msra.mxu0 %v82
    %644 = vmatprep.subr.bf16.mxu0 0
    %645 = vmatpush2.bf16.msra.mxu0 0
    %646 = vmatprep.subr.bf16.mxu0 0
    %647 = vmatpush2.bf16.msra.mxu0 0
    %648 = vmatprep.subr.bf16.mxu0 0
    %649 = vmatpush2.bf16.msra.mxu0 0
    %650 = vmatprep.subr.bf16.mxu0 0
    %651 = vmatpush2.bf16.msra.mxu0 0
    %652 = vmatprep.subr.bf16.mxu0 0
    %653 = vmatpush2.bf16.msra.mxu0 0
    %654 = vmatprep.subr.bf16.mxu0 0
    %655 = vmatpush2.bf16.msra.mxu0 0
    %656 = vmatprep.subr.bf16.mxu0 0
    %657 = vmatpush2.bf16.msra.mxu0 0
    %658 = vmatprep.subr.bf16.mxu0 0
    %659 = vmatpush2.bf16.msra.mxu0 0
    %660 = vmatprep.mubr.bf16.mxu0 0
    %661 = vmatmul.mubr.bf16.gmra.mxu0 %v626
    %v662 = vpop.f32.mrf.mxu0
    %v663 = vadd.f32 0.0, %v662
    %v664 = vpop.f32.mrf.mxu0
    %v665 = vpop.f32.mrf.mxu0
    %v666 = vpop.f32.mrf.mxu0
    %667 = vdwg.mxu0
    %v668 = vadd.f32 %v620, %v663
    %v669 = vmul.f32 %v668, %v67
    %v670 = vtanh.pop %v669
    %v671 = vmul.f32 %v670, %v67
    %v672 = vadd.f32 %v671, %v68
    %v673 = vmul.f32 %v672, %v606
    %675 = vrot.lane.b32.xlu0 %v672, 64
    %v676 = vpop.permute.xlu0 %675
    %v678 = vmul.f32 %v672, %v676
    %680 = vrot.lane.b32.xlu0 %v678, 32
    %v681 = vpop.permute.xlu0 %680
    %v683 = vadd.f32 %v673, %v681
    %v684 = vtanh.pop %v683
    %686 = vrot.lane.b32.xlu0 %v684, 64
    %v687 = vpop.permute.xlu0 %686
    %v689 = vmul.f32 %v672, %v687
    %691 = vrot.lane.b32.xlu0 %v689, 32
    %v692 = vpop.permute.xlu0 %691
    %s694 = scalar_lea.vmem [#allocation4], 56
    %695 = vst.msk [vmem:[%s694] sm:$0xff] %vm86, %v692
    %696 = vst.msk [vmem:[#allocation10] sm:$0xff] %vm86, %v692
    %698 = vrot.lane.b32.xlu0 %v683, 96
    %v699 = vpop.permute.xlu0 %698
    %701 = vst.msk [vmem:[#allocation11] sm:$0xff] %vm86, %v699
    %v702 = vld [vmem:[#allocation5] sm:$0xf]
    %v703 = vld [vmem:[#allocation5 + $0x4] sm:$0xf]
    %v704 = vld [vmem:[#allocation5 + $0x8] sm:$0xf]
    %v705 = vld [vmem:[#allocation5 + $0xc] sm:$0xf]
    %v706 = vld [vmem:[%s2] sm:$0x1]
    %v707 = vld [vmem:[#allocation4] sm:$0xff]
    %v708 = vld [vmem:[#allocation4 + $0x8] sm:$0xff]
    %v709 = vld [vmem:[#allocation4 + $0x10] sm:$0xff]
    %v710 = vld [vmem:[#allocation4 + $0x18] sm:$0xff]
    %v711 = vld [vmem:[#allocation4 + $0x20] sm:$0xff]
    %v712 = vld [vmem:[#allocation4 + $0x28] sm:$0xff]
    %v713 = vld [vmem:[#allocation4 + $0x30] sm:$0xff]
    %v714 = vld [vmem:[#allocation4 + $0x38] sm:$0xff]
    %v715 = vpack.c.bf16 %v708, %v707
    %v716 = vpack.c.bf16 %v710, %v709
    %v717 = vpack.c.bf16 %v712, %v711
    %v718 = vpack.c.bf16 %v714, %v713
    %v720 = vlaneseq
    %v721 = vshrl.u32 %v720, 7
    %v722 = vsub.s32 0, %v721
    %v723 = vrot.slane %v706, %v722
    %v729 = vunpack.c.l.b16 %v702
    %v730 = vunpack.c.l.b16 %v703
    %v731 = vunpack.c.l.b16 %v704
    %v732 = vunpack.c.l.b16 %v705
    %v733 = vpack.c.b16 %v730, %v729
    %v734 = vpack.c.b16 %v732, %v731
    %v738 = vsel %vm86, %v715, 0
    %v741 = vsel %vm86, %v716, 0
    %v744 = vsel %vm86, %v717, 0
    %v747 = vsel %vm86, %v718, 0
    %749 = vmatprep.subr.bf16.mxu0 0
    %750 = vmatpush1.bf16.msra.mxu0 0
    %751 = vmatprep.subr.bf16.mxu0 0
    %752 = vmatpush1.bf16.msra.mxu0 0
    %753 = vmatprep.subr.bf16.mxu0 0
    %754 = vmatpush1.bf16.msra.mxu0 0
    %755 = vmatprep.subr.bf16.mxu0 0
    %756 = vmatpush1.bf16.msra.mxu0 0
    %757 = vmatprep.subr.bf16.mxu0 0
    %758 = vmatpush1.bf16.msra.mxu0 0
    %759 = vmatprep.subr.bf16.mxu0 0
    %760 = vmatpush1.bf16.msra.mxu0 0
    %761 = vmatprep.subr.bf16.mxu0 0
    %762 = vmatpush1.bf16.msra.mxu0 %v734
    %763 = vmatprep.subr.bf16.mxu0 0
    %764 = vmatpush1.bf16.msra.mxu0 %v733
    %765 = vmatprep.subr.bf16.mxu0 0
    %766 = vmatpush2.bf16.msra.mxu0 0
    %767 = vmatprep.subr.bf16.mxu0 0
    %768 = vmatpush2.bf16.msra.mxu0 0
    %769 = vmatprep.subr.bf16.mxu0 0
    %770 = vmatpush2.bf16.msra.mxu0 0
    %771 = vmatprep.subr.bf16.mxu0 0
    %772 = vmatpush2.bf16.msra.mxu0 0
    %773 = vmatprep.subr.bf16.mxu0 0
    %774 = vmatpush2.bf16.msra.mxu0 0
    %775 = vmatprep.subr.bf16.mxu0 0
    %776 = vmatpush2.bf16.msra.mxu0 0
    %777 = vmatprep.subr.bf16.mxu0 0
    %778 = vmatpush2.bf16.msra.mxu0 0
    %779 = vmatprep.subr.bf16.mxu0 0
    %780 = vmatpush2.bf16.msra.mxu0 0
    %781 = vmatprep.mubr.bf16.mxu0 0
    %782 = vmatmul.mubr.bf16.gmra.mxu0 %v738
    %v783 = vpop.f32.mrf.mxu0
    %v784 = vadd.f32 %v723, %v783
    %v785 = vpop.f32.mrf.mxu0
    %v786 = vpop.f32.mrf.mxu0
    %v787 = vadd.f32 %v723, %v786
    %v788 = vpop.f32.mrf.mxu0
    %789 = vmatprep.mubr.bf16.mxu0 0
    %790 = vmatmul.mubr.bf16.gmra.mxu0 %v741
    %v791 = vpop.f32.mrf.mxu0
    %v792 = vadd.f32 %v723, %v791
    %v793 = vpop.f32.mrf.mxu0
    %v794 = vpop.f32.mrf.mxu0
    %v795 = vadd.f32 %v723, %v794
    %v796 = vpop.f32.mrf.mxu0
    %797 = vmatprep.mubr.bf16.mxu0 0
    %798 = vmatmul.mubr.bf16.gmra.mxu0 %v744
    %v799 = vpop.f32.mrf.mxu0
    %v800 = vadd.f32 %v723, %v799
    %v801 = vpop.f32.mrf.mxu0
    %v802 = vpop.f32.mrf.mxu0
    %v803 = vadd.f32 %v723, %v802
    %v804 = vpop.f32.mrf.mxu0
    %805 = vmatprep.mubr.bf16.mxu0 0
    %806 = vmatmul.mubr.bf16.gmra.mxu0 %v747
    %v807 = vpop.f32.mrf.mxu0
    %v808 = vadd.f32 %v723, %v807
    %v809 = vpop.f32.mrf.mxu0
    %v810 = vpop.f32.mrf.mxu0
    %v811 = vadd.f32 %v723, %v810
    %v812 = vpop.f32.mrf.mxu0
    %813 = vdwg.mxu0
    %814 = vst [vmem:[#allocation2] sm:$0xff] %v784
    %815 = vst [vmem:[#allocation2 + $0x8] sm:$0xff] %v787
    %816 = vst [vmem:[#allocation2 + $0x10] sm:$0xff] %v792
    %817 = vst [vmem:[#allocation2 + $0x18] sm:$0xff] %v795
    %818 = vst [vmem:[#allocation2 + $0x20] sm:$0xff] %v800
    %819 = vst [vmem:[#allocation2 + $0x28] sm:$0xff] %v803
    %820 = vst [vmem:[#allocation2 + $0x30] sm:$0xff] %v808
    %821 = vst [vmem:[#allocation2 + $0x38] sm:$0xff] %v811
    %s822 = scalar_lea.vmem [#allocation8], 16
    %v823 = vld [vmem:[%s822] sm:$0xf]
    %v824 = vld [vmem:[%s822 + $0x4] sm:$0xf]
    %v825 = vld [vmem:[%s822 + $0x8] sm:$0xf]
    %v826 = vld [vmem:[%s822 + $0xc] sm:$0xf]
    %v827 = vld [vmem:[#allocation2] sm:$0xff]
    %v832 = vunpack.c.l.b16 %v823
    %v833 = vunpack.c.l.b16 %v824
    %v834 = vunpack.c.l.b16 %v825
    %v835 = vunpack.c.l.b16 %v826
    %v836 = vpack.c.b16 %v833, %v832
    %v837 = vpack.c.b16 %v835, %v834
    %840 = vmatprep.subr.bf16.mxu0 0
    %841 = vmatpush1.bf16.msra.mxu0 0
    %842 = vmatprep.subr.bf16.mxu0 0
    %843 = vmatpush1.bf16.msra.mxu0 0
    %844 = vmatprep.subr.bf16.mxu0 0
    %845 = vmatpush1.bf16.msra.mxu0 0
    %846 = vmatprep.subr.bf16.mxu0 0
    %847 = vmatpush1.bf16.msra.mxu0 0
    %848 = vmatprep.subr.bf16.mxu0 0
    %849 = vmatpush1.bf16.msra.mxu0 0
    %850 = vmatprep.subr.bf16.mxu0 0
    %851 = vmatpush1.bf16.msra.mxu0 0
    %852 = vmatprep.subr.bf16.mxu0 0
    %853 = vmatpush1.bf16.msra.mxu0 %v837
    %854 = vmatprep.subr.bf16.mxu0 0
    %855 = vmatpush1.bf16.msra.mxu0 %v836
    %856 = vmatprep.subr.bf16.mxu0 0
    %857 = vmatpush2.bf16.msra.mxu0 0
    %858 = vmatprep.subr.bf16.mxu0 0
    %859 = vmatpush2.bf16.msra.mxu0 0
    %860 = vmatprep.subr.bf16.mxu0 0
    %861 = vmatpush2.bf16.msra.mxu0 0
    %862 = vmatprep.subr.bf16.mxu0 0
    %863 = vmatpush2.bf16.msra.mxu0 0
    %864 = vmatprep.subr.bf16.mxu0 0
    %865 = vmatpush2.bf16.msra.mxu0 0
    %866 = vmatprep.subr.bf16.mxu0 0
    %867 = vmatpush2.bf16.msra.mxu0 0
    %868 = vmatprep.subr.bf16.mxu0 0
    %869 = vmatpush2.bf16.msra.mxu0 0
    %870 = vmatprep.subr.bf16.mxu0 0
    %871 = vmatpush2.bf16.msra.mxu0 0
    %872 = vmatprep.mubr.bf16.mxu0 0
    %873 = vmatmul.mubr.bf16.gmra.mxu0 %v88
    %v874 = vpop.f32.mrf.mxu0
    %v875 = vadd.f32 0.0, %v874
    %v876 = vpop.f32.mrf.mxu0
    %v877 = vpop.f32.mrf.mxu0
    %v878 = vpop.f32.mrf.mxu0
    %879 = vdwg.mxu0
    %v880 = vadd.f32 %v827, %v875
    %v881 = vmul.f32 %v880, %v67
    %v882 = vtanh.pop %v881
    %v883 = vmul.f32 %v882, %v67
    %v884 = vadd.f32 %v883, %v68
    %v885 = vmul.f32 %v884, 0.0
    %887 = vrot.lane.b32.xlu0 %v884, 64
    %v888 = vpop.permute.xlu0 %887
    %v890 = vmul.f32 %v884, %v888
    %892 = vrot.lane.b32.xlu0 %v890, 32
    %v893 = vpop.permute.xlu0 %892
    %v895 = vadd.f32 %v885, %v893
    %v896 = vtanh.pop %v895
    %898 = vrot.lane.b32.xlu0 %v896, 64
    %v899 = vpop.permute.xlu0 %898
    %v901 = vmul.f32 %v884, %v899
    %v902 = vld [vmem:[%s157] sm:$0xff]
    %v903 = vpack.c.bf16 %v901, %v901
    %905 = vrot.lane.b32.xlu0 %v903, 32
    %v906 = vpop.permute.xlu0 %905
    %v908 = vsel %vm86, %v906, 0
    %910 = vmatprep.subr.bf16.mxu0 0
    %911 = vmatpush1.bf16.msra.mxu0 0
    %912 = vmatprep.subr.bf16.mxu0 0
    %913 = vmatpush1.bf16.msra.mxu0 0
    %914 = vmatprep.subr.bf16.mxu0 0
    %915 = vmatpush1.bf16.msra.mxu0 0
    %916 = vmatprep.subr.bf16.mxu0 0
    %917 = vmatpush1.bf16.msra.mxu0 0
    %918 = vmatprep.subr.bf16.mxu0 0
    %919 = vmatpush1.bf16.msra.mxu0 0
    %920 = vmatprep.subr.bf16.mxu0 0
    %921 = vmatpush1.bf16.msra.mxu0 0
    %922 = vmatprep.subr.bf16.mxu0 0
    %923 = vmatpush1.bf16.msra.mxu0 %v837
    %924 = vmatprep.subr.bf16.mxu0 0
    %925 = vmatpush1.bf16.msra.mxu0 %v836
    %926 = vmatprep.subr.bf16.mxu0 0
    %927 = vmatpush2.bf16.msra.mxu0 0
    %928 = vmatprep.subr.bf16.mxu0 0
    %929 = vmatpush2.bf16.msra.mxu0 0
    %930 = vmatprep.subr.bf16.mxu0 0
    %931 = vmatpush2.bf16.msra.mxu0 0
    %932 = vmatprep.subr.bf16.mxu0 0
    %933 = vmatpush2.bf16.msra.mxu0 0
    %934 = vmatprep.subr.bf16.mxu0 0
    %935 = vmatpush2.bf16.msra.mxu0 0
    %936 = vmatprep.subr.bf16.mxu0 0
    %937 = vmatpush2.bf16.msra.mxu0 0
    %938 = vmatprep.subr.bf16.mxu0 0
    %939 = vmatpush2.bf16.msra.mxu0 0
    %940 = vmatprep.subr.bf16.mxu0 0
    %941 = vmatpush2.bf16.msra.mxu0 0
    %942 = vmatprep.mubr.bf16.mxu0 0
    %943 = vmatmul.mubr.bf16.gmra.mxu0 %v908
    %v944 = vpop.f32.mrf.mxu0
    %v945 = vadd.f32 0.0, %v944
    %v946 = vpop.f32.mrf.mxu0
    %v947 = vpop.f32.mrf.mxu0
    %v948 = vpop.f32.mrf.mxu0
    %949 = vdwg.mxu0
    %v950 = vadd.f32 %v902, %v945
    %v951 = vmul.f32 %v950, %v67
    %v952 = vtanh.pop %v951
    %v953 = vmul.f32 %v952, %v67
    %v954 = vadd.f32 %v953, %v68
    %v955 = vmul.f32 %v954, %v895
    %957 = vrot.lane.b32.xlu0 %v954, 64
    %v958 = vpop.permute.xlu0 %957
    %v960 = vmul.f32 %v954, %v958
    %962 = vrot.lane.b32.xlu0 %v960, 32
    %v963 = vpop.permute.xlu0 %962
    %v965 = vadd.f32 %v955, %v963
    %v966 = vtanh.pop %v965
    %968 = vrot.lane.b32.xlu0 %v966, 64
    %v969 = vpop.permute.xlu0 %968
    %v971 = vmul.f32 %v954, %v969
    %v972 = vld [vmem:[%s234] sm:$0xff]
    %v973 = vpack.c.bf16 %v971, %v971
    %975 = vrot.lane.b32.xlu0 %v973, 32
    %v976 = vpop.permute.xlu0 %975
    %v978 = vsel %vm86, %v976, 0
    %980 = vmatprep.subr.bf16.mxu0 0
    %981 = vmatpush1.bf16.msra.mxu0 0
    %982 = vmatprep.subr.bf16.mxu0 0
    %983 = vmatpush1.bf16.msra.mxu0 0
    %984 = vmatprep.subr.bf16.mxu0 0
    %985 = vmatpush1.bf16.msra.mxu0 0
    %986 = vmatprep.subr.bf16.mxu0 0
    %987 = vmatpush1.bf16.msra.mxu0 0
    %988 = vmatprep.subr.bf16.mxu0 0
    %989 = vmatpush1.bf16.msra.mxu0 0
    %990 = vmatprep.subr.bf16.mxu0 0
    %991 = vmatpush1.bf16.msra.mxu0 0
    %992 = vmatprep.subr.bf16.mxu0 0
    %993 = vmatpush1.bf16.msra.mxu0 %v837
    %994 = vmatprep.subr.bf16.mxu0 0
    %995 = vmatpush1.bf16.msra.mxu0 %v836
    %996 = vmatprep.subr.bf16.mxu0 0
    %997 = vmatpush2.bf16.msra.mxu0 0
    %998 = vmatprep.subr.bf16.mxu0 0
    %999 = vmatpush2.bf16.msra.mxu0 0
    %1000 = vmatprep.subr.bf16.mxu0 0
    %1001 = vmatpush2.bf16.msra.mxu0 0
    %1002 = vmatprep.subr.bf16.mxu0 0
    %1003 = vmatpush2.bf16.msra.mxu0 0
    %1004 = vmatprep.subr.bf16.mxu0 0
    %1005 = vmatpush2.bf16.msra.mxu0 0
    %1006 = vmatprep.subr.bf16.mxu0 0
    %1007 = vmatpush2.bf16.msra.mxu0 0
    %1008 = vmatprep.subr.bf16.mxu0 0
    %1009 = vmatpush2.bf16.msra.mxu0 0
    %1010 = vmatprep.subr.bf16.mxu0 0
    %1011 = vmatpush2.bf16.msra.mxu0 0
    %1012 = vmatprep.mubr.bf16.mxu0 0
    %1013 = vmatmul.mubr.bf16.gmra.mxu0 %v978
    %v1014 = vpop.f32.mrf.mxu0
    %v1015 = vadd.f32 0.0, %v1014
    %v1016 = vpop.f32.mrf.mxu0
    %v1017 = vpop.f32.mrf.mxu0
    %v1018 = vpop.f32.mrf.mxu0
    %1019 = vdwg.mxu0
    %v1020 = vadd.f32 %v972, %v1015
    %v1021 = vmul.f32 %v1020, %v67
    %v1022 = vtanh.pop %v1021
    %v1023 = vmul.f32 %v1022, %v67
    %v1024 = vadd.f32 %v1023, %v68
    %v1025 = vmul.f32 %v1024, %v965
    %1027 = vrot.lane.b32.xlu0 %v1024, 64
    %v1028 = vpop.permute.xlu0 %1027
    %v1030 = vmul.f32 %v1024, %v1028
    %1032 = vrot.lane.b32.xlu0 %v1030, 32
    %v1033 = vpop.permute.xlu0 %1032
    %v1035 = vadd.f32 %v1025, %v1033
    %v1036 = vtanh.pop %v1035
    %1038 = vrot.lane.b32.xlu0 %v1036, 64
    %v1039 = vpop.permute.xlu0 %1038
    %v1041 = vmul.f32 %v1024, %v1039
    %v1042 = vld [vmem:[%s311] sm:$0xff]
    %v1043 = vpack.c.bf16 %v1041, %v1041
    %1045 = vrot.lane.b32.xlu0 %v1043, 32
    %v1046 = vpop.permute.xlu0 %1045
    %v1048 = vsel %vm86, %v1046, 0
    %1050 = vmatprep.subr.bf16.mxu0 0
    %1051 = vmatpush1.bf16.msra.mxu0 0
    %1052 = vmatprep.subr.bf16.mxu0 0
    %1053 = vmatpush1.bf16.msra.mxu0 0
    %1054 = vmatprep.subr.bf16.mxu0 0
    %1055 = vmatpush1.bf16.msra.mxu0 0
    %1056 = vmatprep.subr.bf16.mxu0 0
    %1057 = vmatpush1.bf16.msra.mxu0 0
    %1058 = vmatprep.subr.bf16.mxu0 0
    %1059 = vmatpush1.bf16.msra.mxu0 0
    %1060 = vmatprep.subr.bf16.mxu0 0
    %1061 = vmatpush1.bf16.msra.mxu0 0
    %1062 = vmatprep.subr.bf16.mxu0 0
    %1063 = vmatpush1.bf16.msra.mxu0 %v837
    %1064 = vmatprep.subr.bf16.mxu0 0
    %1065 = vmatpush1.bf16.msra.mxu0 %v836
    %1066 = vmatprep.subr.bf16.mxu0 0
    %1067 = vmatpush2.bf16.msra.mxu0 0
    %1068 = vmatprep.subr.bf16.mxu0 0
    %1069 = vmatpush2.bf16.msra.mxu0 0
    %1070 = vmatprep.subr.bf16.mxu0 0
    %1071 = vmatpush2.bf16.msra.mxu0 0
    %1072 = vmatprep.subr.bf16.mxu0 0
    %1073 = vmatpush2.bf16.msra.mxu0 0
    %1074 = vmatprep.subr.bf16.mxu0 0
    %1075 = vmatpush2.bf16.msra.mxu0 0
    %1076 = vmatprep.subr.bf16.mxu0 0
    %1077 = vmatpush2.bf16.msra.mxu0 0
    %1078 = vmatprep.subr.bf16.mxu0 0
    %1079 = vmatpush2.bf16.msra.mxu0 0
    %1080 = vmatprep.subr.bf16.mxu0 0
    %1081 = vmatpush2.bf16.msra.mxu0 0
    %1082 = vmatprep.mubr.bf16.mxu0 0
    %1083 = vmatmul.mubr.bf16.gmra.mxu0 %v1048
    %v1084 = vpop.f32.mrf.mxu0
    %v1085 = vadd.f32 0.0, %v1084
    %v1086 = vpop.f32.mrf.mxu0
    %v1087 = vpop.f32.mrf.mxu0
    %v1088 = vpop.f32.mrf.mxu0
    %1089 = vdwg.mxu0
    %v1090 = vadd.f32 %v1042, %v1085
    %v1091 = vmul.f32 %v1090, %v67
    %v1092 = vtanh.pop %v1091
    %v1093 = vmul.f32 %v1092, %v67
    %v1094 = vadd.f32 %v1093, %v68
    %v1095 = vmul.f32 %v1094, %v1035
    %1097 = vrot.lane.b32.xlu0 %v1094, 64
    %v1098 = vpop.permute.xlu0 %1097
    %v1100 = vmul.f32 %v1094, %v1098
    %1102 = vrot.lane.b32.xlu0 %v1100, 32
    %v1103 = vpop.permute.xlu0 %1102
    %v1105 = vadd.f32 %v1095, %v1103
    %v1106 = vtanh.pop %v1105
    %1108 = vrot.lane.b32.xlu0 %v1106, 64
    %v1109 = vpop.permute.xlu0 %1108
    %v1111 = vmul.f32 %v1094, %v1109
    %v1112 = vld [vmem:[%s388] sm:$0xff]
    %v1113 = vpack.c.bf16 %v1111, %v1111
    %1115 = vrot.lane.b32.xlu0 %v1113, 32
    %v1116 = vpop.permute.xlu0 %1115
    %v1118 = vsel %vm86, %v1116, 0
    %1120 = vmatprep.subr.bf16.mxu0 0
    %1121 = vmatpush1.bf16.msra.mxu0 0
    %1122 = vmatprep.subr.bf16.mxu0 0
    %1123 = vmatpush1.bf16.msra.mxu0 0
    %1124 = vmatprep.subr.bf16.mxu0 0
    %1125 = vmatpush1.bf16.msra.mxu0 0
    %1126 = vmatprep.subr.bf16.mxu0 0
    %1127 = vmatpush1.bf16.msra.mxu0 0
    %1128 = vmatprep.subr.bf16.mxu0 0
    %1129 = vmatpush1.bf16.msra.mxu0 0
    %1130 = vmatprep.subr.bf16.mxu0 0
    %1131 = vmatpush1.bf16.msra.mxu0 0
    %1132 = vmatprep.subr.bf16.mxu0 0
    %1133 = vmatpush1.bf16.msra.mxu0 %v837
    %1134 = vmatprep.subr.bf16.mxu0 0
    %1135 = vmatpush1.bf16.msra.mxu0 %v836
    %1136 = vmatprep.subr.bf16.mxu0 0
    %1137 = vmatpush2.bf16.msra.mxu0 0
    %1138 = vmatprep.subr.bf16.mxu0 0
    %1139 = vmatpush2.bf16.msra.mxu0 0
    %1140 = vmatprep.subr.bf16.mxu0 0
    %1141 = vmatpush2.bf16.msra.mxu0 0
    %1142 = vmatprep.subr.bf16.mxu0 0
    %1143 = vmatpush2.bf16.msra.mxu0 0
    %1144 = vmatprep.subr.bf16.mxu0 0
    %1145 = vmatpush2.bf16.msra.mxu0 0
    %1146 = vmatprep.subr.bf16.mxu0 0
    %1147 = vmatpush2.bf16.msra.mxu0 0
    %1148 = vmatprep.subr.bf16.mxu0 0
    %1149 = vmatpush2.bf16.msra.mxu0 0
    %1150 = vmatprep.subr.bf16.mxu0 0
    %1151 = vmatpush2.bf16.msra.mxu0 0
    %1152 = vmatprep.mubr.bf16.mxu0 0
    %1153 = vmatmul.mubr.bf16.gmra.mxu0 %v1118
    %v1154 = vpop.f32.mrf.mxu0
    %v1155 = vadd.f32 0.0, %v1154
    %v1156 = vpop.f32.mrf.mxu0
    %v1157 = vpop.f32.mrf.mxu0
    %v1158 = vpop.f32.mrf.mxu0
    %1159 = vdwg.mxu0
    %v1160 = vadd.f32 %v1112, %v1155
    %v1161 = vmul.f32 %v1160, %v67
    %v1162 = vtanh.pop %v1161
    %v1163 = vmul.f32 %v1162, %v67
    %v1164 = vadd.f32 %v1163, %v68
    %v1165 = vmul.f32 %v1164, %v1105
    %1167 = vrot.lane.b32.xlu0 %v1164, 64
    %v1168 = vpop.permute.xlu0 %1167
    %v1170 = vmul.f32 %v1164, %v1168
    %1172 = vrot.lane.b32.xlu0 %v1170, 32
    %v1173 = vpop.permute.xlu0 %1172
    %v1175 = vadd.f32 %v1165, %v1173
    %v1176 = vtanh.pop %v1175
    %1178 = vrot.lane.b32.xlu0 %v1176, 64
    %v1179 = vpop.permute.xlu0 %1178
    %v1181 = vmul.f32 %v1164, %v1179
    %v1182 = vld [vmem:[%s465] sm:$0xff]
    %v1183 = vpack.c.bf16 %v1181, %v1181
    %1185 = vrot.lane.b32.xlu0 %v1183, 32
    %v1186 = vpop.permute.xlu0 %1185
    %v1188 = vsel %vm86, %v1186, 0
    %1190 = vmatprep.subr.bf16.mxu0 0
    %1191 = vmatpush1.bf16.msra.mxu0 0
    %1192 = vmatprep.subr.bf16.mxu0 0
    %1193 = vmatpush1.bf16.msra.mxu0 0
    %1194 = vmatprep.subr.bf16.mxu0 0
    %1195 = vmatpush1.bf16.msra.mxu0 0
    %1196 = vmatprep.subr.bf16.mxu0 0
    %1197 = vmatpush1.bf16.msra.mxu0 0
    %1198 = vmatprep.subr.bf16.mxu0 0
    %1199 = vmatpush1.bf16.msra.mxu0 0
    %1200 = vmatprep.subr.bf16.mxu0 0
    %1201 = vmatpush1.bf16.msra.mxu0 0
    %1202 = vmatprep.subr.bf16.mxu0 0
    %1203 = vmatpush1.bf16.msra.mxu0 %v837
    %1204 = vmatprep.subr.bf16.mxu0 0
    %1205 = vmatpush1.bf16.msra.mxu0 %v836
    %1206 = vmatprep.subr.bf16.mxu0 0
    %1207 = vmatpush2.bf16.msra.mxu0 0
    %1208 = vmatprep.subr.bf16.mxu0 0
    %1209 = vmatpush2.bf16.msra.mxu0 0
    %1210 = vmatprep.subr.bf16.mxu0 0
    %1211 = vmatpush2.bf16.msra.mxu0 0
    %1212 = vmatprep.subr.bf16.mxu0 0
    %1213 = vmatpush2.bf16.msra.mxu0 0
    %1214 = vmatprep.subr.bf16.mxu0 0
    %1215 = vmatpush2.bf16.msra.mxu0 0
    %1216 = vmatprep.subr.bf16.mxu0 0
    %1217 = vmatpush2.bf16.msra.mxu0 0
    %1218 = vmatprep.subr.bf16.mxu0 0
    %1219 = vmatpush2.bf16.msra.mxu0 0
    %1220 = vmatprep.subr.bf16.mxu0 0
    %1221 = vmatpush2.bf16.msra.mxu0 0
    %1222 = vmatprep.mubr.bf16.mxu0 0
    %1223 = vmatmul.mubr.bf16.gmra.mxu0 %v1188
    %v1224 = vpop.f32.mrf.mxu0
    %v1225 = vadd.f32 0.0, %v1224
    %v1226 = vpop.f32.mrf.mxu0
    %v1227 = vpop.f32.mrf.mxu0
    %v1228 = vpop.f32.mrf.mxu0
    %1229 = vdwg.mxu0
    %v1230 = vadd.f32 %v1182, %v1225
    %v1231 = vmul.f32 %v1230, %v67
    %v1232 = vtanh.pop %v1231
    %v1233 = vmul.f32 %v1232, %v67
    %v1234 = vadd.f32 %v1233, %v68
    %v1235 = vmul.f32 %v1234, %v1175
    %1237 = vrot.lane.b32.xlu0 %v1234, 64
    %v1238 = vpop.permute.xlu0 %1237
    %v1240 = vmul.f32 %v1234, %v1238
    %1242 = vrot.lane.b32.xlu0 %v1240, 32
    %v1243 = vpop.permute.xlu0 %1242
    %v1245 = vadd.f32 %v1235, %v1243
    %v1246 = vtanh.pop %v1245
    %1248 = vrot.lane.b32.xlu0 %v1246, 64
    %v1249 = vpop.permute.xlu0 %1248
    %v1251 = vmul.f32 %v1234, %v1249
    %v1252 = vld [vmem:[%s542] sm:$0xff]
    %v1253 = vpack.c.bf16 %v1251, %v1251
    %1255 = vrot.lane.b32.xlu0 %v1253, 32
    %v1256 = vpop.permute.xlu0 %1255
    %v1258 = vsel %vm86, %v1256, 0
    %1260 = vmatprep.subr.bf16.mxu0 0
    %1261 = vmatpush1.bf16.msra.mxu0 0
    %1262 = vmatprep.subr.bf16.mxu0 0
    %1263 = vmatpush1.bf16.msra.mxu0 0
    %1264 = vmatprep.subr.bf16.mxu0 0
    %1265 = vmatpush1.bf16.msra.mxu0 0
    %1266 = vmatprep.subr.bf16.mxu0 0
    %1267 = vmatpush1.bf16.msra.mxu0 0
    %1268 = vmatprep.subr.bf16.mxu0 0
    %1269 = vmatpush1.bf16.msra.mxu0 0
    %1270 = vmatprep.subr.bf16.mxu0 0
    %1271 = vmatpush1.bf16.msra.mxu0 0
    %1272 = vmatprep.subr.bf16.mxu0 0
    %1273 = vmatpush1.bf16.msra.mxu0 %v837
    %1274 = vmatprep.subr.bf16.mxu0 0
    %1275 = vmatpush1.bf16.msra.mxu0 %v836
    %1276 = vmatprep.subr.bf16.mxu0 0
    %1277 = vmatpush2.bf16.msra.mxu0 0
    %1278 = vmatprep.subr.bf16.mxu0 0
    %1279 = vmatpush2.bf16.msra.mxu0 0
    %1280 = vmatprep.subr.bf16.mxu0 0
    %1281 = vmatpush2.bf16.msra.mxu0 0
    %1282 = vmatprep.subr.bf16.mxu0 0
    %1283 = vmatpush2.bf16.msra.mxu0 0
    %1284 = vmatprep.subr.bf16.mxu0 0
    %1285 = vmatpush2.bf16.msra.mxu0 0
    %1286 = vmatprep.subr.bf16.mxu0 0
    %1287 = vmatpush2.bf16.msra.mxu0 0
    %1288 = vmatprep.subr.bf16.mxu0 0
    %1289 = vmatpush2.bf16.msra.mxu0 0
    %1290 = vmatprep.subr.bf16.mxu0 0
    %1291 = vmatpush2.bf16.msra.mxu0 0
    %1292 = vmatprep.mubr.bf16.mxu0 0
    %1293 = vmatmul.mubr.bf16.gmra.mxu0 %v1258
    %v1294 = vpop.f32.mrf.mxu0
    %v1295 = vadd.f32 0.0, %v1294
    %v1296 = vpop.f32.mrf.mxu0
    %v1297 = vpop.f32.mrf.mxu0
    %v1298 = vpop.f32.mrf.mxu0
    %1299 = vdwg.mxu0
    %v1300 = vadd.f32 %v1252, %v1295
    %v1301 = vmul.f32 %v1300, %v67
    %v1302 = vtanh.pop %v1301
    %v1303 = vmul.f32 %v1302, %v67
    %v1304 = vadd.f32 %v1303, %v68
    %v1305 = vmul.f32 %v1304, %v1245
    %1307 = vrot.lane.b32.xlu0 %v1304, 64
    %v1308 = vpop.permute.xlu0 %1307
    %v1310 = vmul.f32 %v1304, %v1308
    %1312 = vrot.lane.b32.xlu0 %v1310, 32
    %v1313 = vpop.permute.xlu0 %1312
    %v1315 = vadd.f32 %v1305, %v1313
    %v1316 = vtanh.pop %v1315
    %1318 = vrot.lane.b32.xlu0 %v1316, 64
    %v1319 = vpop.permute.xlu0 %1318
    %v1321 = vmul.f32 %v1304, %v1319
    %v1322 = vld [vmem:[%s619] sm:$0xff]
    %v1323 = vpack.c.bf16 %v1321, %v1321
    %1325 = vrot.lane.b32.xlu0 %v1323, 32
    %v1326 = vpop.permute.xlu0 %1325
    %v1328 = vsel %vm86, %v1326, 0
    %1330 = vmatprep.subr.bf16.mxu0 0
    %1331 = vmatpush1.bf16.msra.mxu0 0
    %1332 = vmatprep.subr.bf16.mxu0 0
    %1333 = vmatpush1.bf16.msra.mxu0 0
    %1334 = vmatprep.subr.bf16.mxu0 0
    %1335 = vmatpush1.bf16.msra.mxu0 0
    %1336 = vmatprep.subr.bf16.mxu0 0
    %1337 = vmatpush1.bf16.msra.mxu0 0
    %1338 = vmatprep.subr.bf16.mxu0 0
    %1339 = vmatpush1.bf16.msra.mxu0 0
    %1340 = vmatprep.subr.bf16.mxu0 0
    %1341 = vmatpush1.bf16.msra.mxu0 0
    %1342 = vmatprep.subr.bf16.mxu0 0
    %1343 = vmatpush1.bf16.msra.mxu0 %v837
    %1344 = vmatprep.subr.bf16.mxu0 0
    %1345 = vmatpush1.bf16.msra.mxu0 %v836
    %1346 = vmatprep.subr.bf16.mxu0 0
    %1347 = vmatpush2.bf16.msra.mxu0 0
    %1348 = vmatprep.subr.bf16.mxu0 0
    %1349 = vmatpush2.bf16.msra.mxu0 0
    %1350 = vmatprep.subr.bf16.mxu0 0
    %1351 = vmatpush2.bf16.msra.mxu0 0
    %1352 = vmatprep.subr.bf16.mxu0 0
    %1353 = vmatpush2.bf16.msra.mxu0 0
    %1354 = vmatprep.subr.bf16.mxu0 0
    %1355 = vmatpush2.bf16.msra.mxu0 0
    %1356 = vmatprep.subr.bf16.mxu0 0
    %1357 = vmatpush2.bf16.msra.mxu0 0
    %1358 = vmatprep.subr.bf16.mxu0 0
    %1359 = vmatpush2.bf16.msra.mxu0 0
    %1360 = vmatprep.subr.bf16.mxu0 0
    %1361 = vmatpush2.bf16.msra.mxu0 0
    %1362 = vmatprep.mubr.bf16.mxu0 0
    %1363 = vmatmul.mubr.bf16.gmra.mxu0 %v1328
    %v1364 = vpop.f32.mrf.mxu0
    %v1365 = vadd.f32 0.0, %v1364
    %v1366 = vpop.f32.mrf.mxu0
    %v1367 = vpop.f32.mrf.mxu0
    %v1368 = vpop.f32.mrf.mxu0
    %1369 = vdwg.mxu0
    %v1370 = vadd.f32 %v1322, %v1365
    %v1371 = vmul.f32 %v1370, %v67
    %v1372 = vtanh.pop %v1371
    %v1373 = vmul.f32 %v1372, %v67
    %v1374 = vadd.f32 %v1373, %v68
    %v1375 = vmul.f32 %v1374, %v1315
    %1377 = vrot.lane.b32.xlu0 %v1374, 64
    %v1378 = vpop.permute.xlu0 %1377
    %v1380 = vmul.f32 %v1374, %v1378
    %1382 = vrot.lane.b32.xlu0 %v1380, 32
    %v1383 = vpop.permute.xlu0 %1382
    %v1385 = vadd.f32 %v1375, %v1383
    %v1386 = vtanh.pop %v1385
    %1388 = vrot.lane.b32.xlu0 %v1386, 64
    %v1389 = vpop.permute.xlu0 %1388
    %v1391 = vmul.f32 %v1374, %v1389
    %1393 = vrot.lane.b32.xlu0 %v1391, 32
    %v1394 = vpop.permute.xlu0 %1393
    %s1396 = scalar_lea.vmem [#allocation10], 8
    %1397 = vst.msk [vmem:[%s1396] sm:$0xff] %vm86, %v1394
    %1399 = vrot.lane.b32.xlu0 %v1385, 96
    %v1400 = vpop.permute.xlu0 %1399
    %s1402 = scalar_lea.vmem [#allocation11], 8
    %1403 = vst.msk [vmem:[%s1402] sm:$0xff] %vm86, %v1400
    // Predicated region
    $region26: #{tpu_custom_call.1} parent=1 // pred_check
      _
    $region27: #{tpu_custom_call.1} parent=1 // pred_check_branch
      %1405 = sbr.rel (0) target = $region29
    $region28: #{tpu_custom_call.1} parent=1 // pred_region
      %s1407 = ssub.s32 256, 256
      %1408 = vsyncadd [#allocation7], %s1407
      %s1409 = sshll.u32 [#allocation10], 4
      %s1410 = int_to_ptr.vmem [resolvable:$true] %s1409
      %1415 = dma.vmem_to_hbm [thread:$0]  %s1410, 256, %s4, [#allocation7], 128, 128, 8
    $region29: #{tpu_custom_call.1} parent=1 // pred_fallthru
      _
    // Predicated region
    $region30: #{tpu_custom_call.1} parent=1 // pred_check
      _
    $region31: #{tpu_custom_call.1} parent=1 // pred_check_branch
      %1417 = sbr.rel (0) target = $region33
    $region32: #{tpu_custom_call.1} parent=1 // pred_region
      %s1419 = ssub.s32 256, 256
      %1420 = vsyncadd [#allocation12], %s1419
      %s1421 = sshll.u32 [#allocation11], 4
      %s1422 = int_to_ptr.vmem [resolvable:$true] %s1421
      %1427 = dma.vmem_to_hbm [thread:$0]  %s1422, 256, %s5, [#allocation12], 128, 128, 8
    $region33: #{tpu_custom_call.1} parent=1 // pred_fallthru
      _
    // Predicated region
    $region34: #{tpu_custom_call.1} parent=1 // pred_check
      _
    $region35: #{tpu_custom_call.1} parent=1 // pred_check_branch
      %1429 = sbr.rel (0) target = $region37
    $region36: #{tpu_custom_call.1} parent=1 // pred_region
      %1430 = dma.done [#allocation7], 256
    $region37: #{tpu_custom_call.1} parent=1 // pred_fallthru
      _
    // Predicated region
    $region38: #{tpu_custom_call.1} parent=1 // pred_check
      _
    $region39: #{tpu_custom_call.1} parent=1 // pred_check_branch
      %1432 = sbr.rel (0) target = $region41
    $region40: #{tpu_custom_call.1} parent=1 // pred_region
      %1433 = dma.done [#allocation12], 256
    $region41: #{tpu_custom_call.1} parent=1 // pred_fallthru
      _
    %1434 = vsyncpa [#allocation6], 1
    %1435 = vsyncpa [#allocation9], 1
    %1436 = vsyncpa [#allocation7], 1
    %1437 = vsyncpa [#allocation12], 1
  %1438 = vsyncmov [#allocation3]
  %s1439 = vpop.sfrf %1438
  %p1440 = scmp.eq.s32.totalorder %s1439, 0
  %p1441 = pneg %p1440
  %1443 = shalt.err (%p1441)

</llo_original>
